<compile_context>
chip_gen: v6e
topology: v6e:2x2x1
jax: 0.10.0
libtpu: 0.0.40
codegen_flags: <defaults>
</compile_context>

<pallas_src>
import functools

import jax
import jax.numpy as jnp
from jax import lax
from jax.experimental import pallas as pl
from jax.experimental.pallas import tpu as pltpu


# ----------------------------------------------------------------------------
# Pallas kernel: fused 3x3 conv (9 shifted small matmuls) + bias + ReLU
# ----------------------------------------------------------------------------
def _conv3x3_relu_kernel(x_ref, w_ref, b_ref, o_ref, *, H, Wp, KH, KW):
    # x_ref: (1, Cin, Lp)       spatially padded input, flattened per channel
    # w_ref: (KH*KW, Cout, Cin) conv taps
    # b_ref: (Cout, 1)          bias column
    # o_ref: (1, Cout, H*Wp)    transposed, padded-width output (lane-dense)
    L = H * Wp
    x_all = x_ref[0]            # (Cin, Lp) — single VMEM load, reused 9x
    w_all = w_ref[...]          # (KH*KW, Cout, Cin)
    cout = w_all.shape[1]

    acc = jnp.zeros((cout, L), jnp.float32)
    for kh in range(KH):        # static 3x3 unroll (9 MXU pushes)
        for kw in range(KW):
            off = kh * Wp + kw                  # static offset
            xs = x_all[:, off:off + L]          # (Cin, L) shifted window (VMEM/vregs)
            acc = acc + jnp.dot(w_all[kh * KW + kw], xs,
                                preferred_element_type=jnp.float32)
    acc = acc + b_ref[...]                      # (Cout, 1) broadcast over lanes
    o_ref[0] = jnp.maximum(acc, 0.0).astype(o_ref.dtype)


def conv3x3_relu_pallas(x_flat, w9, bias2d, *, H, W, Wp, KH, KW):
    """x_flat: [N, Cin, Lp] f32 (padded, spatially flattened),
       w9: [KH*KW, Cout, Cin], bias2d: [Cout, 1]  ->  [N, Cout, H*Wp] f32."""
    N, Cin, Lp = x_flat.shape
    Cout = w9.shape[1]
    L = H * Wp

    kernel = functools.partial(_conv3x3_relu_kernel, H=H, Wp=Wp, KH=KH, KW=KW)
    return pl.pallas_call(
        kernel,
        out_shape=jax.ShapeDtypeStruct((N, Cout, L), jnp.float32),
        grid_spec=pltpu.PrefetchScalarGridSpec(
            num_scalar_prefetch=0,
            grid=(N,),
            in_specs=[
                # Block dims equal the full array extents on the last two axes,
                # so the (8,128) divisibility rule is satisfied trivially.
                pl.BlockSpec((1, Cin, Lp), lambda n: (n, 0, 0)),
                pl.BlockSpec((KH * KW, Cout, Cin), lambda n: (0, 0, 0)),
                pl.BlockSpec((Cout, 1), lambda n: (0, 0)),
            ],
            out_specs=pl.BlockSpec((1, Cout, L), lambda n: (n, 0, 0)),
        ),
        compiler_params=pltpu.CompilerParams(
            dimension_semantics=("parallel",),
        ),
    )(x_flat, w9, bias2d)


# ----------------------------------------------------------------------------
# The wrapped "model": Conv2d(3x3, pad=1) + ReLU, weights in PyTorch OIHW layout
# ----------------------------------------------------------------------------
def model_forward(params, x_nchw):
    """x_nchw: [N, Cin, H, W] -> [N, Cout, H, W] (PyTorch Conv2d(pad=1)+ReLU)."""
    w_oihw, bias = params["weight"], params["bias"]
    Cout, Cin, KH, KW = w_oihw.shape
    assert (KH, KW) == (3, 3)
    N, _, H, W = x_nchw.shape
    Wp = W + 2                                   # padded width

    # Spatial zero-pad, staying in NCHW (no layout transpose). One extra bottom
    # row so every shifted flat slice of length H*Wp stays in-bounds; it only
    # feeds garbage columns that are dropped below.
    xp = jnp.pad(x_nchw, ((0, 0), (0, 0), (1, 2), (1, 1)))
    x_flat = xp.reshape(N, Cin, (H + 3) * Wp)    # contiguous -> free reshape

    # Weight as 9 taps of (Cout, Cin); bias as (Cout, 1) column.
    w9 = jnp.transpose(w_oihw, (2, 3, 0, 1)).reshape(KH * KW, Cout, Cin)
    bias2d = bias.reshape(Cout, 1)

    out_flat = conv3x3_relu_pallas(x_flat, w9, bias2d,
                                   H=H, W=W, Wp=Wp, KH=KH, KW=KW)
    # [N, Cout, H*Wp] -> NCHW by dropping the padded-width garbage columns.
    return out_flat.reshape(N, Cout, H, Wp)[:, :, :, :W]


# ----------------------------------------------------------------------------
# WarpModule equivalent: pure pass-through to the wrapped model
# ----------------------------------------------------------------------------
def warp_module_forward(params, x):
    # WarpModule.forward(x) == self.model(x)
    return model_forward(params, x)


# ----------------------------------------------------------------------------
# Pure-JAX reference for correctness check
# ----------------------------------------------------------------------------
def reference_forward(params, x_nchw):
    y = lax.conv_general_dilated(
        x_nchw, params["weight"],
        window_strides=(1, 1), padding=((1, 1), (1, 1)),
        dimension_numbers=("NCHW", "OIHW", "NCHW"),
    )
    y = y + params["bias"].reshape(1, -1, 1, 1)
    return jnp.maximum(y, 0.0)


if __name__ == "__main__":
    key = jax.random.PRNGKey(0)
    k_x, k_w, k_b = jax.random.split(key, 3)

    N, Cin, H, W = 2, 4, 16, 16
    Cout, KH, KW = 8, 3, 3

    x = jax.random.normal(k_x, (N, Cin, H, W), dtype=jnp.float32)
    params = {
        "weight": 0.1 * jax.random.normal(k_w, (Cout, Cin, KH, KW), jnp.float32),
        "bias": 0.05 * jax.random.normal(k_b, (Cout,), jnp.float32),
    }

    out = jax.block_until_ready(warp_module_forward(params, x))
    ref = jax.block_until_ready(reference_forward(params, x))

    assert out.shape == (N, Cout, H, W), out.shape
    err = float(jnp.max(jnp.abs(out - ref)))
    assert err < 1e-3, err
    print("KERNEL_OK")
</pallas_src>

<mosaic_0001>
module attributes {stable_mosaic.version = 11 : i64} {
  func.func @_conv3x3_relu_kernel(%arg0: i32, %arg1: memref<1x4x342xf32, #tpu.memory_space<vmem>>, %arg2: memref<9x8x4xf32, #tpu.memory_space<vmem>>, %arg3: memref<8x1xf32, #tpu.memory_space<vmem>>, %arg4: memref<1x8x288xf32, #tpu.memory_space<vmem>>) attributes {dimension_semantics = [#tpu.dimension_semantics<parallel>], iteration_bounds = array<i64: 2>, scalar_prefetch = 0 : i64, scratch_operands = 0 : i64, tpu.core_type = #tpu.core_type<tc>, window_params = [{transform_indices = @transform_0, window_bounds = array<i64: 1, 4, 342>}, {pipeline_mode = #tpu.pipeline_mode<synchronous>, transform_indices = @transform_1, window_bounds = array<i64: 9, 8, 4>}, {pipeline_mode = #tpu.pipeline_mode<synchronous>, transform_indices = @transform_2, window_bounds = array<i64: 8, 1>}, {transform_indices = @transform_3, window_bounds = array<i64: 1, 8, 288>}]} {
    %c0 = arith.constant 0 : index
    %c0_0 = arith.constant 0 : index
    %c0_1 = arith.constant 0 : index
    %0 = vector.load %arg1[%c0, %c0_0, %c0_1] : memref<1x4x342xf32, #tpu.memory_space<vmem>>, vector<1x4x342xf32>
    %1 = vector.shape_cast %0 : vector<1x4x342xf32> to vector<4x342xf32>
    %c0_2 = arith.constant 0 : index
    %c0_3 = arith.constant 0 : index
    %c0_4 = arith.constant 0 : index
    %2 = vector.load %arg2[%c0_2, %c0_3, %c0_4] : memref<9x8x4xf32, #tpu.memory_space<vmem>>, vector<9x8x4xf32>
    %cst = arith.constant 0.000000e+00 : f32
    %3 = vector.broadcast %cst : f32 to vector<8x288xf32>
    %4 = vector.extract_strided_slice %1 {offsets = [0, 0], sizes = [4, 288], strides = [1, 1]} : vector<4x342xf32> to vector<4x288xf32>
    %5 = vector.extract_strided_slice %2 {offsets = [0, 0, 0], sizes = [1, 8, 4], strides = [1, 1, 1]} : vector<9x8x4xf32> to vector<1x8x4xf32>
    %6 = vector.shape_cast %5 : vector<1x8x4xf32> to vector<8x4xf32>
    %cst_5 = arith.constant dense<0.000000e+00> : vector<8x288xf32>
    %7 = tpu.matmul %6, %4, %cst_5 {dimension_numbers = #tpu.dot_dimension_numbers<[1], [0], [0], [1], [0, 0, 1, 1], [], []>} : vector<8x4xf32>, vector<4x288xf32>, vector<8x288xf32> -> vector<8x288xf32>
    %8 = arith.addf %3, %7 : vector<8x288xf32>
    %9 = vector.extract_strided_slice %1 {offsets = [0, 1], sizes = [4, 288], strides = [1, 1]} : vector<4x342xf32> to vector<4x288xf32>
    %10 = vector.extract_strided_slice %2 {offsets = [1, 0, 0], sizes = [1, 8, 4], strides = [1, 1, 1]} : vector<9x8x4xf32> to vector<1x8x4xf32>
    %11 = vector.shape_cast %10 : vector<1x8x4xf32> to vector<8x4xf32>
    %cst_6 = arith.constant dense<0.000000e+00> : vector<8x288xf32>
    %12 = tpu.matmul %11, %9, %cst_6 {dimension_numbers = #tpu.dot_dimension_numbers<[1], [0], [0], [1], [0, 0, 1, 1], [], []>} : vector<8x4xf32>, vector<4x288xf32>, vector<8x288xf32> -> vector<8x288xf32>
    %13 = arith.addf %8, %12 : vector<8x288xf32>
    %14 = vector.extract_strided_slice %1 {offsets = [0, 2], sizes = [4, 288], strides = [1, 1]} : vector<4x342xf32> to vector<4x288xf32>
    %15 = vector.extract_strided_slice %2 {offsets = [2, 0, 0], sizes = [1, 8, 4], strides = [1, 1, 1]} : vector<9x8x4xf32> to vector<1x8x4xf32>
    %16 = vector.shape_cast %15 : vector<1x8x4xf32> to vector<8x4xf32>
    %cst_7 = arith.constant dense<0.000000e+00> : vector<8x288xf32>
    %17 = tpu.matmul %16, %14, %cst_7 {dimension_numbers = #tpu.dot_dimension_numbers<[1], [0], [0], [1], [0, 0, 1, 1], [], []>} : vector<8x4xf32>, vector<4x288xf32>, vector<8x288xf32> -> vector<8x288xf32>
    %18 = arith.addf %13, %17 : vector<8x288xf32>
    %19 = vector.extract_strided_slice %1 {offsets = [0, 18], sizes = [4, 288], strides = [1, 1]} : vector<4x342xf32> to vector<4x288xf32>
    %20 = vector.extract_strided_slice %2 {offsets = [3, 0, 0], sizes = [1, 8, 4], strides = [1, 1, 1]} : vector<9x8x4xf32> to vector<1x8x4xf32>
    %21 = vector.shape_cast %20 : vector<1x8x4xf32> to vector<8x4xf32>
    %cst_8 = arith.constant dense<0.000000e+00> : vector<8x288xf32>
    %22 = tpu.matmul %21, %19, %cst_8 {dimension_numbers = #tpu.dot_dimension_numbers<[1], [0], [0], [1], [0, 0, 1, 1], [], []>} : vector<8x4xf32>, vector<4x288xf32>, vector<8x288xf32> -> vector<8x288xf32>
    %23 = arith.addf %18, %22 : vector<8x288xf32>
    %24 = vector.extract_strided_slice %1 {offsets = [0, 19], sizes = [4, 288], strides = [1, 1]} : vector<4x342xf32> to vector<4x288xf32>
    %25 = vector.extract_strided_slice %2 {offsets = [4, 0, 0], sizes = [1, 8, 4], strides = [1, 1, 1]} : vector<9x8x4xf32> to vector<1x8x4xf32>
    %26 = vector.shape_cast %25 : vector<1x8x4xf32> to vector<8x4xf32>
    %cst_9 = arith.constant dense<0.000000e+00> : vector<8x288xf32>
    %27 = tpu.matmul %26, %24, %cst_9 {dimension_numbers = #tpu.dot_dimension_numbers<[1], [0], [0], [1], [0, 0, 1, 1], [], []>} : vector<8x4xf32>, vector<4x288xf32>, vector<8x288xf32> -> vector<8x288xf32>
    %28 = arith.addf %23, %27 : vector<8x288xf32>
    %29 = vector.extract_strided_slice %1 {offsets = [0, 20], sizes = [4, 288], strides = [1, 1]} : vector<4x342xf32> to vector<4x288xf32>
    %30 = vector.extract_strided_slice %2 {offsets = [5, 0, 0], sizes = [1, 8, 4], strides = [1, 1, 1]} : vector<9x8x4xf32> to vector<1x8x4xf32>
    %31 = vector.shape_cast %30 : vector<1x8x4xf32> to vector<8x4xf32>
    %cst_10 = arith.constant dense<0.000000e+00> : vector<8x288xf32>
    %32 = tpu.matmul %31, %29, %cst_10 {dimension_numbers = #tpu.dot_dimension_numbers<[1], [0], [0], [1], [0, 0, 1, 1], [], []>} : vector<8x4xf32>, vector<4x288xf32>, vector<8x288xf32> -> vector<8x288xf32>
    %33 = arith.addf %28, %32 : vector<8x288xf32>
    %34 = vector.extract_strided_slice %1 {offsets = [0, 36], sizes = [4, 288], strides = [1, 1]} : vector<4x342xf32> to vector<4x288xf32>
    %35 = vector.extract_strided_slice %2 {offsets = [6, 0, 0], sizes = [1, 8, 4], strides = [1, 1, 1]} : vector<9x8x4xf32> to vector<1x8x4xf32>
    %36 = vector.shape_cast %35 : vector<1x8x4xf32> to vector<8x4xf32>
    %cst_11 = arith.constant dense<0.000000e+00> : vector<8x288xf32>
    %37 = tpu.matmul %36, %34, %cst_11 {dimension_numbers = #tpu.dot_dimension_numbers<[1], [0], [0], [1], [0, 0, 1, 1], [], []>} : vector<8x4xf32>, vector<4x288xf32>, vector<8x288xf32> -> vector<8x288xf32>
    %38 = arith.addf %33, %37 : vector<8x288xf32>
    %39 = vector.extract_strided_slice %1 {offsets = [0, 37], sizes = [4, 288], strides = [1, 1]} : vector<4x342xf32> to vector<4x288xf32>
    %40 = vector.extract_strided_slice %2 {offsets = [7, 0, 0], sizes = [1, 8, 4], strides = [1, 1, 1]} : vector<9x8x4xf32> to vector<1x8x4xf32>
    %41 = vector.shape_cast %40 : vector<1x8x4xf32> to vector<8x4xf32>
    %cst_12 = arith.constant dense<0.000000e+00> : vector<8x288xf32>
    %42 = tpu.matmul %41, %39, %cst_12 {dimension_numbers = #tpu.dot_dimension_numbers<[1], [0], [0], [1], [0, 0, 1, 1], [], []>} : vector<8x4xf32>, vector<4x288xf32>, vector<8x288xf32> -> vector<8x288xf32>
    %43 = arith.addf %38, %42 : vector<8x288xf32>
    %44 = vector.extract_strided_slice %1 {offsets = [0, 38], sizes = [4, 288], strides = [1, 1]} : vector<4x342xf32> to vector<4x288xf32>
    %45 = vector.extract_strided_slice %2 {offsets = [8, 0, 0], sizes = [1, 8, 4], strides = [1, 1, 1]} : vector<9x8x4xf32> to vector<1x8x4xf32>
    %46 = vector.shape_cast %45 : vector<1x8x4xf32> to vector<8x4xf32>
    %cst_13 = arith.constant dense<0.000000e+00> : vector<8x288xf32>
    %47 = tpu.matmul %46, %44, %cst_13 {dimension_numbers = #tpu.dot_dimension_numbers<[1], [0], [0], [1], [0, 0, 1, 1], [], []>} : vector<8x4xf32>, vector<4x288xf32>, vector<8x288xf32> -> vector<8x288xf32>
    %48 = arith.addf %43, %47 : vector<8x288xf32>
    %c0_14 = arith.constant 0 : index
    %c0_15 = arith.constant 0 : index
    %49 = vector.load %arg3[%c0_14, %c0_15] : memref<8x1xf32, #tpu.memory_space<vmem>>, vector<8x1xf32>
    %50 = vector.broadcast %49 : vector<8x1xf32> to vector<8x288xf32>
    %51 = arith.addf %48, %50 : vector<8x288xf32>
    %cst_16 = arith.constant 0.000000e+00 : f32
    %52 = vector.broadcast %cst_16 : f32 to vector<8x288xf32>
    %53 = arith.maximumf %51, %52 : vector<8x288xf32>
    %c0_17 = arith.constant 0 : index
    %c0_18 = arith.constant 0 : index
    %c0_19 = arith.constant 0 : index
    %54 = vector.load %arg4[%c0_17, %c0_18, %c0_19] : memref<1x8x288xf32, #tpu.memory_space<vmem>>, vector<1x8x288xf32>
    %55 = vector.shape_cast %54 : vector<1x8x288xf32> to vector<8x288xf32>
    %56 = vector.shape_cast %53 : vector<8x288xf32> to vector<1x8x288xf32>
    tpu.vector_store %arg4[%c0_17, %c0_18, %c0_19], %56 {strides = array<i32>} : memref<1x8x288xf32, #tpu.memory_space<vmem>>, vector<1x8x288xf32>,
    return
  }
  func.func @transform_0(%arg0: i32) -> (i32, i32, i32) {
    %c0_i32 = arith.constant 0 : i32
    %c0_i32_0 = arith.constant 0 : i32
    %c0_i32_1 = arith.constant 0 : i32
    return %arg0, %c0_i32, %c0_i32_0 : i32, i32, i32
  }
  func.func @transform_1(%arg0: i32) -> (i32, i32, i32) {
    %c0_i32 = arith.constant 0 : i32
    %c0_i32_0 = arith.constant 0 : i32
    %c0_i32_1 = arith.constant 0 : i32
    %c0_i32_2 = arith.constant 0 : i32
    return %c0_i32, %c0_i32_0, %c0_i32_1 : i32, i32, i32
  }
  func.func @transform_2(%arg0: i32) -> (i32, i32) {
    %c0_i32 = arith.constant 0 : i32
    %c0_i32_0 = arith.constant 0 : i32
    %c0_i32_1 = arith.constant 0 : i32
    return %c0_i32, %c0_i32_0 : i32, i32
  }
  func.func @transform_3(%arg0: i32) -> (i32, i32, i32) {
    %c0_i32 = arith.constant 0 : i32
    %c0_i32_0 = arith.constant 0 : i32
    %c0_i32_1 = arith.constant 0 : i32
    return %arg0, %c0_i32, %c0_i32_0 : i32, i32, i32
  }
}

</mosaic_0001>

<llo_original>
// kernel: tpu_custom_call.1
$region0: #{tpu_custom_call.1}
  #allocation0 [shape = 'u32[]', space=smem, size = 0x4, offset = 0x4, fixed_abs, tag = 'smem constant byte address 0x4 - core index']
  #allocation1 [shape = 'u32[144,128]{1,0:T(1,128)}', space=vmem, size = 0x12000, scoped, tag = 'internal scratch']
  %s0 = inlined_call_operand.vmem [shape: f32[2,4,342], index: 0, kind: input, shape index: {}]
  %s1 = inlined_call_operand.vmem [shape: f32[9,8,4], index: 1, kind: input, shape index: {}]
  %s2 = inlined_call_operand.vmem [shape: f32[8,1], index: 2, kind: input, shape index: {}]
  %s3 = inlined_call_operand.hbm [shape: f32[2,8,288], index: 3, kind: output, shape index: {}]
  %s4 = sld [smem:[#allocation0]]
  $region45: #{tpu_custom_call.1} parent=0
    _
  %s6 = ssub.s32 1, %s4
  %s7 = scalar_select 0, %s6, %s4
  $region1: #{tpu_custom_call.1} parent=0
    #allocation2 [shape = 'u8[24576]{0}', space=vmem, size = 0x6000, scoped, tag = 'output window, operand 0']
    #allocation3 [shape = 's32[2]{0}', space=sflag, size = 0x8, scoped, tag = 'scoped memory for tpu_custom_call.1']
    %8 = vsyncpa [#allocation3], 0
    %s9 = scalar_lea.sflag [#allocation3], 1
    %10 = vsyncpa %s9, 0
    loop: start=0, step=1, limit=4
    $region2: #{tpu_custom_call.1} parent=1 // loop_pre_header
      _
    $region3: #{tpu_custom_call.1} parent=1 // loop_header
      %s12 = sphi 0, %s16
      %p13 = scmp.ge.s32.totalorder %s12, 4
      %s22 = sphi 0, %s24
      %s25 = sphi 0, %s22
      %s26 = sphi 0, %s25
      %s42 = sphi 0, %s26
      %s46 = sphi 0, %s46
      %s48 = sphi 0, %s46
      %s49 = sphi 0, %s48
      %s63 = sphi 0, %s49
      %s67 = sphi 0, %s67
      %s69 = sphi 0, %s67
      %s70 = sphi 0, %s69
      %s84 = sphi 0, %s70
      %s90 = sphi 0, %s92
      %s93 = sphi 0, %s90
      %s94 = sphi 0, %s93
      %s110 = sphi 0, %s94
    $region4: #{tpu_custom_call.1} parent=1 // loop_header_branch
      %15 = sbr.rel (%p13) target = $region8
    $region5: #{tpu_custom_call.1} parent=1 // loop_body
      %s17 = ssub.s32 %s12, 1
      %s18 = ssub.s32 %s12, 2
      %s19 = sadd.s32 %s12, 1
      %s20 = ssub.s32 %s12, %s19
      %p21 = scmp.eq.s32.totalorder %s20, 0
      %s23 = sadd.s32 %s22, 1
      %s24 = scalar_select %p21, %s22, %s23
      %p27 = pneg %p21
      %p28 = scmp.eq.s32.totalorder %s12, 1
      %p29 = por %p27, %p28
      %p30 = scmp.ne.s32.totalorder %s22, %s25
      %p31 = scmp.eq.s32.totalorder %s12, 0
      %p32 = por %p30, %p31
      %p33 = scmp.ne.s32.totalorder %s22, %s25
      %p34 = scmp.eq.s32.totalorder %s17, 1
      %p35 = por %p33, %p34
      %p36 = scmp.ne.s32.totalorder %s25, %s26
      %p37 = scmp.eq.s32.totalorder %s17, 0
      %p38 = por %p36, %p37
      %p39 = scmp.ne.s32.totalorder %s25, %s26
      %p40 = scmp.eq.s32.totalorder %s18, 1
      %p41 = por %p39, %p40
      %p43 = scmp.ne.s32.totalorder %s26, %s42
      %p44 = scmp.eq.s32.totalorder %s18, 0
      %p45 = por %p43, %p44
      %s47 = sadd.s32 %s46, 1
      %p50 = scmp.eq.s32.totalorder %s12, 1
      %p51 = scmp.ne.s32.totalorder %s46, %s48
      %p52 = scmp.eq.s32.totalorder %s12, 0
      %p53 = por %p51, %p52
      %p54 = scmp.ne.s32.totalorder %s46, %s48
      %p55 = scmp.eq.s32.totalorder %s17, 1
      %p56 = por %p54, %p55
      %p57 = scmp.ne.s32.totalorder %s48, %s49
      %p58 = scmp.eq.s32.totalorder %s17, 0
      %p59 = por %p57, %p58
      %p60 = scmp.ne.s32.totalorder %s48, %s49
      %p61 = scmp.eq.s32.totalorder %s18, 1
      %p62 = por %p60, %p61
      %p64 = scmp.ne.s32.totalorder %s49, %s63
      %p65 = scmp.eq.s32.totalorder %s18, 0
      %p66 = por %p64, %p65
      %s68 = sadd.s32 %s67, 1
      %p71 = scmp.eq.s32.totalorder %s12, 1
      %p72 = scmp.ne.s32.totalorder %s67, %s69
      %p73 = scmp.eq.s32.totalorder %s12, 0
      %p74 = por %p72, %p73
      %p75 = scmp.ne.s32.totalorder %s67, %s69
      %p76 = scmp.eq.s32.totalorder %s17, 1
      %p77 = por %p75, %p76
      %p78 = scmp.ne.s32.totalorder %s69, %s70
      %p79 = scmp.eq.s32.totalorder %s17, 0
      %p80 = por %p78, %p79
      %p81 = scmp.ne.s32.totalorder %s69, %s70
      %p82 = scmp.eq.s32.totalorder %s18, 1
      %p83 = por %p81, %p82
      %p85 = scmp.ne.s32.totalorder %s70, %s84
      %p86 = scmp.eq.s32.totalorder %s18, 0
      %p87 = por %p85, %p86
      %s88 = ssub.s32 %s12, %s19
      %p89 = scmp.eq.s32.totalorder %s88, 0
      %s91 = sadd.s32 %s90, 1
      %s92 = scalar_select %p89, %s90, %s91
      %p95 = pneg %p89
      %p96 = scmp.eq.s32.totalorder %s12, 1
      %p97 = por %p95, %p96
      %p98 = scmp.ne.s32.totalorder %s90, %s93
      %p99 = scmp.eq.s32.totalorder %s12, 0
      %p100 = por %p98, %p99
      %p101 = scmp.ne.s32.totalorder %s90, %s93
      %p102 = scmp.eq.s32.totalorder %s17, 1
      %p103 = por %p101, %p102
      %p104 = scmp.ne.s32.totalorder %s93, %s94
      %p105 = scmp.eq.s32.totalorder %s17, 0
      %p106 = por %p104, %p105
      %p107 = scmp.ne.s32.totalorder %s93, %s94
      %p108 = scmp.eq.s32.totalorder %s18, 1
      %p109 = por %p107, %p108
      %p111 = scmp.ne.s32.totalorder %s94, %s110
      %p112 = scmp.eq.s32.totalorder %s18, 0
      %p113 = por %p111, %p112
      %p114 = scmp.le.s32.totalorder 1, %s12
      %p115 = scmp.lt.s32.totalorder %s12, 3
      %p116 = pnand %p114, %p115
      %p117 = pneg %p116
      // Predicated region
      $region9: #{tpu_custom_call.1} parent=5 // pred_check
        _
      $region10: #{tpu_custom_call.1} parent=5 // pred_check_branch
        %119 = sbr.rel (%p116) target = $region12
      $region11: #{tpu_custom_call.1} parent=5 // pred_region
        %s120 = ssub.s32 %s12, 1
        // Predicated region
        $region13: #{tpu_custom_call.1} parent=11 // pred_check
          %p121 = pneg %p59
        $region14: #{tpu_custom_call.1} parent=11 // pred_check_branch
          %123 = sbr.rel (%p121) target = $region16
        $region15: #{tpu_custom_call.1} parent=11 // pred_region
          _
        $region16: #{tpu_custom_call.1} parent=11 // pred_fallthru
          _
        // Predicated region
        $region17: #{tpu_custom_call.1} parent=11 // pred_check
          %p124 = pneg %p80
        $region18: #{tpu_custom_call.1} parent=11 // pred_check_branch
          %126 = sbr.rel (%p124) target = $region20
        $region19: #{tpu_custom_call.1} parent=11 // pred_region
          _
        $region20: #{tpu_custom_call.1} parent=11 // pred_fallthru
          _
      $region12: #{tpu_custom_call.1} parent=5 // pred_fallthru
        _
      %p127 = scmp.lt.s32.totalorder %s12, 2
      // Predicated region
      $region21: #{tpu_custom_call.1} parent=5 // pred_check
        %p128 = pneg %p127
      $region22: #{tpu_custom_call.1} parent=5 // pred_check_branch
        %130 = sbr.rel (%p128) target = $region24
      $region23: #{tpu_custom_call.1} parent=5 // pred_region
        // Predicated region
        $region25: #{tpu_custom_call.1} parent=23 // pred_check
          %p131 = pneg %p32
        $region26: #{tpu_custom_call.1} parent=23 // pred_check_branch
          %133 = sbr.rel (%p131) target = $region28
        $region27: #{tpu_custom_call.1} parent=23 // pred_region
          %p134 = scmp.lt.s32.totalorder %s12, 1
          %s135 = scalar_select %p134, %s12, 1
          %s136 = smul.addr %s135, 3
          %s137 = smul.addr %s136, 4
          %s138 = scalar_lea.vmem %s0, %s137
        $region28: #{tpu_custom_call.1} parent=23 // pred_fallthru
          _
      $region24: #{tpu_custom_call.1} parent=5 // pred_fallthru
        _
      %p139 = scmp.le.s32.totalorder 1, %s12
      %p140 = scmp.lt.s32.totalorder %s12, 3
      %p141 = pnand %p139, %p140
      %p142 = pneg %p141
      // Predicated region
      $region29: #{tpu_custom_call.1} parent=5 // pred_check
        _
      $region30: #{tpu_custom_call.1} parent=5 // pred_check_branch
        %144 = sbr.rel (%p141) target = $region32
      $region31: #{tpu_custom_call.1} parent=5 // pred_region
        %s145 = ssub.s32 %s12, 1
        %p146 = scmp.lt.s32.totalorder %s17, 1
        %s147 = scalar_select %p146, %s17, 1
        %s148 = smul.addr %s147, 3
        %s149 = smul.addr %s148, 4
        %s150 = scalar_lea.vmem %s0, %s149
        %p151 = pneg %p38
        %p152 = pneg %p35
        %p153 = pneg %p59
        %p154 = pneg %p56
        %p155 = pneg %p80
        %p156 = pneg %p77
        %p157 = pneg %p106
        %p158 = pneg %p103
        %s159 = sand.u32 %s93, 1
        %s160 = scalar_lea.sflag [#allocation3], %s159
        %s161 = sand.u32 %s93, 1
        %s162 = smul.addr %s161, 24
        %s163 = scalar_lea.vmem [#allocation2], %s162
        %p164 = scmp.lt.s32.totalorder %s17, 1
        %s165 = scalar_select %p164, %s17, 1
        %s166 = smul.addr %s165, 3
        %s167 = smul.addr %s166, 4
        %s168 = scalar_lea.vmem %s0, %s167
        %v169 = vld [vmem:[%s168] sm:$0xff]
        %v170 = vld [vmem:[%s168 + $0x8] sm:$0xf]
        %v171 = vld [vmem:[%s1] sm:$0xff]
        %v172 = vld [vmem:[%s1 + $0x8] sm:$0xff]
        %v173 = vld [vmem:[%s1 + $0x10] sm:$0xff]
        %v174 = vld [vmem:[%s1 + $0x18] sm:$0xff]
        %v175 = vld [vmem:[%s1 + $0x20] sm:$0xff]
        %v176 = vld [vmem:[%s1 + $0x28] sm:$0xff]
        %v177 = vld [vmem:[%s1 + $0x30] sm:$0xff]
        %v178 = vld [vmem:[%s1 + $0x38] sm:$0xff]
        %v179 = vld [vmem:[%s1 + $0x40] sm:$0xff]
        %v182 = vcombine.high %v169, %v169
        %183 = vrot.lane.b32.xlu0 %v169, 127
        %v184 = vpop.permute.xlu0 %183
        %185 = vrot.lane.b32.xlu0 %v182, 127
        %v186 = vpop.permute.xlu0 %185
        %187 = vrot.lane.b32.xlu0 %v170, 127
        %v188 = vpop.permute.xlu0 %187
        %vm189 = vcmask 1039360
        %v190 = vsel %vm189, %v184, %v186
        %v191 = vsel %vm189, %v186, %v188
        %vm192 = vcmask 31744
        %v194 = vsel %vm192, %v172, 0
        %vm196 = vcmask 1043456
        %v197 = vsel %vm196, %v190, 0
        %v199 = vsel %vm196, %v191, 0
        %v201 = vsel %vm196, %v188, 0
        %203 = vmatprep.subr.mxu0 0.0
        %204 = vmatpush1.msra.mxu0 0.0
        %205 = vmatprep.subr.mxu0 0.0
        %206 = vmatpush1.msra.mxu0 0.0
        %207 = vmatprep.subr.mxu0 0.0
        %208 = vmatpush1.msra.mxu0 0.0
        %209 = vmatprep.subr.mxu0 0.0
        %210 = vmatpush1.msra.mxu0 0.0
        %211 = vmatprep.subr.mxu0 0.0
        %212 = vmatpush1.msra.mxu0 0.0
        %213 = vmatprep.subr.mxu0 0.0
        %214 = vmatpush1.msra.mxu0 0.0
        %215 = vmatprep.subr.mxu0 0.0
        %216 = vmatpush1.msra.mxu0 0.0
        %217 = vmatprep.subr.mxu0 0.0
        %218 = vmatpush1.msra.mxu0 0.0
        %219 = vmatprep.subr.mxu0 0.0
        %220 = vmatpush1.msra.mxu0 0.0
        %221 = vmatprep.subr.mxu0 0.0
        %222 = vmatpush1.msra.mxu0 0.0
        %223 = vmatprep.subr.mxu0 0.0
        %224 = vmatpush1.msra.mxu0 0.0
        %225 = vmatprep.subr.mxu0 0.0
        %226 = vmatpush1.msra.mxu0 0.0
        %227 = vmatprep.subr.mxu0 0.0
        %228 = vmatpush1.msra.mxu0 0.0
        %229 = vmatprep.subr.mxu0 0.0
        %230 = vmatpush1.msra.mxu0 0.0
        %231 = vmatprep.subr.mxu0 0.0
        %232 = vmatpush1.msra.mxu0 0.0
        %233 = vmatprep.subr.mxu0 %v199
        %234 = vmatpush1.msra.mxu0 %v197
        %235 = vmatprep.subr.mxu0 0.0
        %236 = vmatpush2.msra.mxu0 0.0
        %237 = vmatprep.subr.mxu0 0.0
        %238 = vmatpush2.msra.mxu0 0.0
        %239 = vmatprep.subr.mxu0 0.0
        %240 = vmatpush2.msra.mxu0 0.0
        %241 = vmatprep.subr.mxu0 0.0
        %242 = vmatpush2.msra.mxu0 0.0
        %243 = vmatprep.subr.mxu0 0.0
        %244 = vmatpush2.msra.mxu0 0.0
        %245 = vmatprep.subr.mxu0 0.0
        %246 = vmatpush2.msra.mxu0 0.0
        %247 = vmatprep.subr.mxu0 0.0
        %248 = vmatpush2.msra.mxu0 0.0
        %249 = vmatprep.subr.mxu0 0.0
        %250 = vmatpush2.msra.mxu0 0.0
        %251 = vmatprep.subr.mxu0 0.0
        %252 = vmatpush2.msra.mxu0 0.0
        %253 = vmatprep.subr.mxu0 0.0
        %254 = vmatpush2.msra.mxu0 0.0
        %255 = vmatprep.subr.mxu0 0.0
        %256 = vmatpush2.msra.mxu0 0.0
        %257 = vmatprep.subr.mxu0 0.0
        %258 = vmatpush2.msra.mxu0 0.0
        %259 = vmatprep.subr.mxu0 0.0
        %260 = vmatpush2.msra.mxu0 0.0
        %261 = vmatprep.subr.mxu0 0.0
        %262 = vmatpush2.msra.mxu0 0.0
        %263 = vmatprep.subr.mxu0 0.0
        %264 = vmatpush2.msra.mxu0 0.0
        %265 = vmatprep.subr.mxu0 0.0
        %266 = vmatpush2.msra.mxu0 0.0
        %267 = vmatprep.mubr.f32.mxu0 0.0
        %268 = vmatmul.mubr.f32.gmra.mxu0 %v194
        %v269 = vpop.f32.mrf.mxu0
        %v270 = vadd.f32 0.0, %v269
        %v271 = vpop.f32.mrf.mxu0
        %v272 = vadd.f32 0.0, %v271
        %273 = vdwg.mxu0
        %274 = vmatprep.subr.mxu0 0.0
        %275 = vmatpush1.msra.mxu0 0.0
        %276 = vmatprep.subr.mxu0 0.0
        %277 = vmatpush1.msra.mxu0 0.0
        %278 = vmatprep.subr.mxu0 0.0
        %279 = vmatpush1.msra.mxu0 0.0
        %280 = vmatprep.subr.mxu0 0.0
        %281 = vmatpush1.msra.mxu0 0.0
        %282 = vmatprep.subr.mxu0 0.0
        %283 = vmatpush1.msra.mxu0 0.0
        %284 = vmatprep.subr.mxu0 0.0
        %285 = vmatpush1.msra.mxu0 0.0
        %286 = vmatprep.subr.mxu0 0.0
        %287 = vmatpush1.msra.mxu0 0.0
        %288 = vmatprep.subr.mxu0 0.0
        %289 = vmatpush1.msra.mxu0 0.0
        %290 = vmatprep.subr.mxu0 0.0
        %291 = vmatpush1.msra.mxu0 0.0
        %292 = vmatprep.subr.mxu0 0.0
        %293 = vmatpush1.msra.mxu0 0.0
        %294 = vmatprep.subr.mxu0 0.0
        %295 = vmatpush1.msra.mxu0 0.0
        %296 = vmatprep.subr.mxu0 0.0
        %297 = vmatpush1.msra.mxu0 0.0
        %298 = vmatprep.subr.mxu0 0.0
        %299 = vmatpush1.msra.mxu0 0.0
        %300 = vmatprep.subr.mxu0 0.0
        %301 = vmatpush1.msra.mxu0 0.0
        %302 = vmatprep.subr.mxu0 0.0
        %303 = vmatpush1.msra.mxu0 0.0
        %304 = vmatprep.subr.mxu0 0.0
        %305 = vmatpush1.msra.mxu0 %v201
        %306 = vmatprep.subr.mxu0 0.0
        %307 = vmatpush2.msra.mxu0 0.0
        %308 = vmatprep.subr.mxu0 0.0
        %309 = vmatpush2.msra.mxu0 0.0
        %310 = vmatprep.subr.mxu0 0.0
        %311 = vmatpush2.msra.mxu0 0.0
        %312 = vmatprep.subr.mxu0 0.0
        %313 = vmatpush2.msra.mxu0 0.0
        %314 = vmatprep.subr.mxu0 0.0
        %315 = vmatpush2.msra.mxu0 0.0
        %316 = vmatprep.subr.mxu0 0.0
        %317 = vmatpush2.msra.mxu0 0.0
        %318 = vmatprep.subr.mxu0 0.0
        %319 = vmatpush2.msra.mxu0 0.0
        %320 = vmatprep.subr.mxu0 0.0
        %321 = vmatpush2.msra.mxu0 0.0
        %322 = vmatprep.subr.mxu0 0.0
        %323 = vmatpush2.msra.mxu0 0.0
        %324 = vmatprep.subr.mxu0 0.0
        %325 = vmatpush2.msra.mxu0 0.0
        %326 = vmatprep.subr.mxu0 0.0
        %327 = vmatpush2.msra.mxu0 0.0
        %328 = vmatprep.subr.mxu0 0.0
        %329 = vmatpush2.msra.mxu0 0.0
        %330 = vmatprep.subr.mxu0 0.0
        %331 = vmatpush2.msra.mxu0 0.0
        %332 = vmatprep.subr.mxu0 0.0
        %333 = vmatpush2.msra.mxu0 0.0
        %334 = vmatprep.subr.mxu0 0.0
        %335 = vmatpush2.msra.mxu0 0.0
        %336 = vmatprep.subr.mxu0 0.0
        %337 = vmatpush2.msra.mxu0 0.0
        %338 = vmatprep.mubr.f32.mxu0 0.0
        %339 = vmatmul.mubr.f32.gmra.mxu0 %v194
        %v340 = vpop.f32.mrf.mxu0
        %v341 = vadd.f32 0.0, %v340
        %v342 = vpop.f32.mrf.mxu0
        %343 = vdwg.mxu0
        %v345 = vsel %vm192, %v171, 0
        %v347 = vsel %vm196, %v169, 0
        %v349 = vsel %vm196, %v182, 0
        %v351 = vsel %vm196, %v170, 0
        %353 = vmatprep.subr.mxu0 0.0
        %354 = vmatpush1.msra.mxu0 0.0
        %355 = vmatprep.subr.mxu0 0.0
        %356 = vmatpush1.msra.mxu0 0.0
        %357 = vmatprep.subr.mxu0 0.0
        %358 = vmatpush1.msra.mxu0 0.0
        %359 = vmatprep.subr.mxu0 0.0
        %360 = vmatpush1.msra.mxu0 0.0
        %361 = vmatprep.subr.mxu0 0.0
        %362 = vmatpush1.msra.mxu0 0.0
        %363 = vmatprep.subr.mxu0 0.0
        %364 = vmatpush1.msra.mxu0 0.0
        %365 = vmatprep.subr.mxu0 0.0
        %366 = vmatpush1.msra.mxu0 0.0
        %367 = vmatprep.subr.mxu0 0.0
        %368 = vmatpush1.msra.mxu0 0.0
        %369 = vmatprep.subr.mxu0 0.0
        %370 = vmatpush1.msra.mxu0 0.0
        %371 = vmatprep.subr.mxu0 0.0
        %372 = vmatpush1.msra.mxu0 0.0
        %373 = vmatprep.subr.mxu0 0.0
        %374 = vmatpush1.msra.mxu0 0.0
        %375 = vmatprep.subr.mxu0 0.0
        %376 = vmatpush1.msra.mxu0 0.0
        %377 = vmatprep.subr.mxu0 0.0
        %378 = vmatpush1.msra.mxu0 0.0
        %379 = vmatprep.subr.mxu0 0.0
        %380 = vmatpush1.msra.mxu0 0.0
        %381 = vmatprep.subr.mxu0 0.0
        %382 = vmatpush1.msra.mxu0 0.0
        %383 = vmatprep.subr.mxu0 %v349
        %384 = vmatpush1.msra.mxu0 %v347
        %385 = vmatprep.subr.mxu0 0.0
        %386 = vmatpush2.msra.mxu0 0.0
        %387 = vmatprep.subr.mxu0 0.0
        %388 = vmatpush2.msra.mxu0 0.0
        %389 = vmatprep.subr.mxu0 0.0
        %390 = vmatpush2.msra.mxu0 0.0
        %391 = vmatprep.subr.mxu0 0.0
        %392 = vmatpush2.msra.mxu0 0.0
        %393 = vmatprep.subr.mxu0 0.0
        %394 = vmatpush2.msra.mxu0 0.0
        %395 = vmatprep.subr.mxu0 0.0
        %396 = vmatpush2.msra.mxu0 0.0
        %397 = vmatprep.subr.mxu0 0.0
        %398 = vmatpush2.msra.mxu0 0.0
        %399 = vmatprep.subr.mxu0 0.0
        %400 = vmatpush2.msra.mxu0 0.0
        %401 = vmatprep.subr.mxu0 0.0
        %402 = vmatpush2.msra.mxu0 0.0
        %403 = vmatprep.subr.mxu0 0.0
        %404 = vmatpush2.msra.mxu0 0.0
        %405 = vmatprep.subr.mxu0 0.0
        %406 = vmatpush2.msra.mxu0 0.0
        %407 = vmatprep.subr.mxu0 0.0
        %408 = vmatpush2.msra.mxu0 0.0
        %409 = vmatprep.subr.mxu0 0.0
        %410 = vmatpush2.msra.mxu0 0.0
        %411 = vmatprep.subr.mxu0 0.0
        %412 = vmatpush2.msra.mxu0 0.0
        %413 = vmatprep.subr.mxu0 0.0
        %414 = vmatpush2.msra.mxu0 0.0
        %415 = vmatprep.subr.mxu0 0.0
        %416 = vmatpush2.msra.mxu0 0.0
        %417 = vmatprep.mubr.f32.mxu0 0.0
        %418 = vmatmul.mubr.f32.gmra.mxu0 %v345
        %v419 = vpop.f32.mrf.mxu0
        %v420 = vadd.f32 %v270, %v419
        %v421 = vpop.f32.mrf.mxu0
        %v422 = vadd.f32 %v272, %v421
        %423 = vdwg.mxu0
        %424 = vmatprep.subr.mxu0 0.0
        %425 = vmatpush1.msra.mxu0 0.0
        %426 = vmatprep.subr.mxu0 0.0
        %427 = vmatpush1.msra.mxu0 0.0
        %428 = vmatprep.subr.mxu0 0.0
        %429 = vmatpush1.msra.mxu0 0.0
        %430 = vmatprep.subr.mxu0 0.0
        %431 = vmatpush1.msra.mxu0 0.0
        %432 = vmatprep.subr.mxu0 0.0
        %433 = vmatpush1.msra.mxu0 0.0
        %434 = vmatprep.subr.mxu0 0.0
        %435 = vmatpush1.msra.mxu0 0.0
        %436 = vmatprep.subr.mxu0 0.0
        %437 = vmatpush1.msra.mxu0 0.0
        %438 = vmatprep.subr.mxu0 0.0
        %439 = vmatpush1.msra.mxu0 0.0
        %440 = vmatprep.subr.mxu0 0.0
        %441 = vmatpush1.msra.mxu0 0.0
        %442 = vmatprep.subr.mxu0 0.0
        %443 = vmatpush1.msra.mxu0 0.0
        %444 = vmatprep.subr.mxu0 0.0
        %445 = vmatpush1.msra.mxu0 0.0
        %446 = vmatprep.subr.mxu0 0.0
        %447 = vmatpush1.msra.mxu0 0.0
        %448 = vmatprep.subr.mxu0 0.0
        %449 = vmatpush1.msra.mxu0 0.0
        %450 = vmatprep.subr.mxu0 0.0
        %451 = vmatpush1.msra.mxu0 0.0
        %452 = vmatprep.subr.mxu0 0.0
        %453 = vmatpush1.msra.mxu0 0.0
        %454 = vmatprep.subr.mxu0 0.0
        %455 = vmatpush1.msra.mxu0 %v351
        %456 = vmatprep.subr.mxu0 0.0
        %457 = vmatpush2.msra.mxu0 0.0
        %458 = vmatprep.subr.mxu0 0.0
        %459 = vmatpush2.msra.mxu0 0.0
        %460 = vmatprep.subr.mxu0 0.0
        %461 = vmatpush2.msra.mxu0 0.0
        %462 = vmatprep.subr.mxu0 0.0
        %463 = vmatpush2.msra.mxu0 0.0
        %464 = vmatprep.subr.mxu0 0.0
        %465 = vmatpush2.msra.mxu0 0.0
        %466 = vmatprep.subr.mxu0 0.0
        %467 = vmatpush2.msra.mxu0 0.0
        %468 = vmatprep.subr.mxu0 0.0
        %469 = vmatpush2.msra.mxu0 0.0
        %470 = vmatprep.subr.mxu0 0.0
        %471 = vmatpush2.msra.mxu0 0.0
        %472 = vmatprep.subr.mxu0 0.0
        %473 = vmatpush2.msra.mxu0 0.0
        %474 = vmatprep.subr.mxu0 0.0
        %475 = vmatpush2.msra.mxu0 0.0
        %476 = vmatprep.subr.mxu0 0.0
        %477 = vmatpush2.msra.mxu0 0.0
        %478 = vmatprep.subr.mxu0 0.0
        %479 = vmatpush2.msra.mxu0 0.0
        %480 = vmatprep.subr.mxu0 0.0
        %481 = vmatpush2.msra.mxu0 0.0
        %482 = vmatprep.subr.mxu0 0.0
        %483 = vmatpush2.msra.mxu0 0.0
        %484 = vmatprep.subr.mxu0 0.0
        %485 = vmatpush2.msra.mxu0 0.0
        %486 = vmatprep.subr.mxu0 0.0
        %487 = vmatpush2.msra.mxu0 0.0
        %488 = vmatprep.mubr.f32.mxu0 0.0
        %489 = vmatmul.mubr.f32.gmra.mxu0 %v345
        %v490 = vpop.f32.mrf.mxu0
        %v491 = vadd.f32 %v341, %v490
        %v492 = vpop.f32.mrf.mxu0
        %493 = vdwg.mxu0
        %494 = vrot.lane.b32.xlu0 %v169, 126
        %v495 = vpop.permute.xlu0 %494
        %496 = vrot.lane.b32.xlu0 %v182, 126
        %v497 = vpop.permute.xlu0 %496
        %498 = vrot.lane.b32.xlu0 %v170, 126
        %v499 = vpop.permute.xlu0 %498
        %vm500 = vcmask 1031168
        %v501 = vsel %vm500, %v495, %v497
        %v502 = vsel %vm500, %v497, %v499
        %v504 = vsel %vm192, %v173, 0
        %v506 = vsel %vm196, %v501, 0
        %v508 = vsel %vm196, %v502, 0
        %v510 = vsel %vm196, %v499, 0
        %512 = vmatprep.subr.mxu0 0.0
        %513 = vmatpush1.msra.mxu0 0.0
        %514 = vmatprep.subr.mxu0 0.0
        %515 = vmatpush1.msra.mxu0 0.0
        %516 = vmatprep.subr.mxu0 0.0
        %517 = vmatpush1.msra.mxu0 0.0
        %518 = vmatprep.subr.mxu0 0.0
        %519 = vmatpush1.msra.mxu0 0.0
        %520 = vmatprep.subr.mxu0 0.0
        %521 = vmatpush1.msra.mxu0 0.0
        %522 = vmatprep.subr.mxu0 0.0
        %523 = vmatpush1.msra.mxu0 0.0
        %524 = vmatprep.subr.mxu0 0.0
        %525 = vmatpush1.msra.mxu0 0.0
        %526 = vmatprep.subr.mxu0 0.0
        %527 = vmatpush1.msra.mxu0 0.0
        %528 = vmatprep.subr.mxu0 0.0
        %529 = vmatpush1.msra.mxu0 0.0
        %530 = vmatprep.subr.mxu0 0.0
        %531 = vmatpush1.msra.mxu0 0.0
        %532 = vmatprep.subr.mxu0 0.0
        %533 = vmatpush1.msra.mxu0 0.0
        %534 = vmatprep.subr.mxu0 0.0
        %535 = vmatpush1.msra.mxu0 0.0
        %536 = vmatprep.subr.mxu0 0.0
        %537 = vmatpush1.msra.mxu0 0.0
        %538 = vmatprep.subr.mxu0 0.0
        %539 = vmatpush1.msra.mxu0 0.0
        %540 = vmatprep.subr.mxu0 0.0
        %541 = vmatpush1.msra.mxu0 0.0
        %542 = vmatprep.subr.mxu0 %v508
        %543 = vmatpush1.msra.mxu0 %v506
        %544 = vmatprep.subr.mxu0 0.0
        %545 = vmatpush2.msra.mxu0 0.0
        %546 = vmatprep.subr.mxu0 0.0
        %547 = vmatpush2.msra.mxu0 0.0
        %548 = vmatprep.subr.mxu0 0.0
        %549 = vmatpush2.msra.mxu0 0.0
        %550 = vmatprep.subr.mxu0 0.0
        %551 = vmatpush2.msra.mxu0 0.0
        %552 = vmatprep.subr.mxu0 0.0
        %553 = vmatpush2.msra.mxu0 0.0
        %554 = vmatprep.subr.mxu0 0.0
        %555 = vmatpush2.msra.mxu0 0.0
        %556 = vmatprep.subr.mxu0 0.0
        %557 = vmatpush2.msra.mxu0 0.0
        %558 = vmatprep.subr.mxu0 0.0
        %559 = vmatpush2.msra.mxu0 0.0
        %560 = vmatprep.subr.mxu0 0.0
        %561 = vmatpush2.msra.mxu0 0.0
        %562 = vmatprep.subr.mxu0 0.0
        %563 = vmatpush2.msra.mxu0 0.0
        %564 = vmatprep.subr.mxu0 0.0
        %565 = vmatpush2.msra.mxu0 0.0
        %566 = vmatprep.subr.mxu0 0.0
        %567 = vmatpush2.msra.mxu0 0.0
        %568 = vmatprep.subr.mxu0 0.0
        %569 = vmatpush2.msra.mxu0 0.0
        %570 = vmatprep.subr.mxu0 0.0
        %571 = vmatpush2.msra.mxu0 0.0
        %572 = vmatprep.subr.mxu0 0.0
        %573 = vmatpush2.msra.mxu0 0.0
        %574 = vmatprep.subr.mxu0 0.0
        %575 = vmatpush2.msra.mxu0 0.0
        %576 = vmatprep.mubr.f32.mxu0 0.0
        %577 = vmatmul.mubr.f32.gmra.mxu0 %v504
        %v578 = vpop.f32.mrf.mxu0
        %v579 = vadd.f32 0.0, %v578
        %v580 = vpop.f32.mrf.mxu0
        %v581 = vadd.f32 0.0, %v580
        %582 = vdwg.mxu0
        %583 = vmatprep.subr.mxu0 0.0
        %584 = vmatpush1.msra.mxu0 0.0
        %585 = vmatprep.subr.mxu0 0.0
        %586 = vmatpush1.msra.mxu0 0.0
        %587 = vmatprep.subr.mxu0 0.0
        %588 = vmatpush1.msra.mxu0 0.0
        %589 = vmatprep.subr.mxu0 0.0
        %590 = vmatpush1.msra.mxu0 0.0
        %591 = vmatprep.subr.mxu0 0.0
        %592 = vmatpush1.msra.mxu0 0.0
        %593 = vmatprep.subr.mxu0 0.0
        %594 = vmatpush1.msra.mxu0 0.0
        %595 = vmatprep.subr.mxu0 0.0
        %596 = vmatpush1.msra.mxu0 0.0
        %597 = vmatprep.subr.mxu0 0.0
        %598 = vmatpush1.msra.mxu0 0.0
        %599 = vmatprep.subr.mxu0 0.0
        %600 = vmatpush1.msra.mxu0 0.0
        %601 = vmatprep.subr.mxu0 0.0
        %602 = vmatpush1.msra.mxu0 0.0
        %603 = vmatprep.subr.mxu0 0.0
        %604 = vmatpush1.msra.mxu0 0.0
        %605 = vmatprep.subr.mxu0 0.0
        %606 = vmatpush1.msra.mxu0 0.0
        %607 = vmatprep.subr.mxu0 0.0
        %608 = vmatpush1.msra.mxu0 0.0
        %609 = vmatprep.subr.mxu0 0.0
        %610 = vmatpush1.msra.mxu0 0.0
        %611 = vmatprep.subr.mxu0 0.0
        %612 = vmatpush1.msra.mxu0 0.0
        %613 = vmatprep.subr.mxu0 0.0
        %614 = vmatpush1.msra.mxu0 %v510
        %615 = vmatprep.subr.mxu0 0.0
        %616 = vmatpush2.msra.mxu0 0.0
        %617 = vmatprep.subr.mxu0 0.0
        %618 = vmatpush2.msra.mxu0 0.0
        %619 = vmatprep.subr.mxu0 0.0
        %620 = vmatpush2.msra.mxu0 0.0
        %621 = vmatprep.subr.mxu0 0.0
        %622 = vmatpush2.msra.mxu0 0.0
        %623 = vmatprep.subr.mxu0 0.0
        %624 = vmatpush2.msra.mxu0 0.0
        %625 = vmatprep.subr.mxu0 0.0
        %626 = vmatpush2.msra.mxu0 0.0
        %627 = vmatprep.subr.mxu0 0.0
        %628 = vmatpush2.msra.mxu0 0.0
        %629 = vmatprep.subr.mxu0 0.0
        %630 = vmatpush2.msra.mxu0 0.0
        %631 = vmatprep.subr.mxu0 0.0
        %632 = vmatpush2.msra.mxu0 0.0
        %633 = vmatprep.subr.mxu0 0.0
        %634 = vmatpush2.msra.mxu0 0.0
        %635 = vmatprep.subr.mxu0 0.0
        %636 = vmatpush2.msra.mxu0 0.0
        %637 = vmatprep.subr.mxu0 0.0
        %638 = vmatpush2.msra.mxu0 0.0
        %639 = vmatprep.subr.mxu0 0.0
        %640 = vmatpush2.msra.mxu0 0.0
        %641 = vmatprep.subr.mxu0 0.0
        %642 = vmatpush2.msra.mxu0 0.0
        %643 = vmatprep.subr.mxu0 0.0
        %644 = vmatpush2.msra.mxu0 0.0
        %645 = vmatprep.subr.mxu0 0.0
        %646 = vmatpush2.msra.mxu0 0.0
        %647 = vmatprep.mubr.f32.mxu0 0.0
        %648 = vmatmul.mubr.f32.gmra.mxu0 %v504
        %v649 = vpop.f32.mrf.mxu0
        %v650 = vadd.f32 0.0, %v649
        %v651 = vpop.f32.mrf.mxu0
        %652 = vdwg.mxu0
        %v653 = vadd.f32 %v420, %v579
        %v654 = vadd.f32 %v422, %v581
        %v655 = vadd.f32 %v491, %v650
        %656 = vrot.lane.b32.xlu0 %v169, 110
        %v657 = vpop.permute.xlu0 %656
        %658 = vrot.lane.b32.xlu0 %v182, 110
        %v659 = vpop.permute.xlu0 %658
        %660 = vrot.lane.b32.xlu0 %v170, 110
        %v661 = vpop.permute.xlu0 %660
        %vm662 = vcmask 900096
        %v663 = vsel %vm662, %v657, %v659
        %v664 = vsel %vm662, %v659, %v661
        %v666 = vsel %vm192, %v174, 0
        %v668 = vsel %vm196, %v663, 0
        %v670 = vsel %vm196, %v664, 0
        %v672 = vsel %vm196, %v661, 0
        %674 = vmatprep.subr.mxu0 0.0
        %675 = vmatpush1.msra.mxu0 0.0
        %676 = vmatprep.subr.mxu0 0.0
        %677 = vmatpush1.msra.mxu0 0.0
        %678 = vmatprep.subr.mxu0 0.0
        %679 = vmatpush1.msra.mxu0 0.0
        %680 = vmatprep.subr.mxu0 0.0
        %681 = vmatpush1.msra.mxu0 0.0
        %682 = vmatprep.subr.mxu0 0.0
        %683 = vmatpush1.msra.mxu0 0.0
        %684 = vmatprep.subr.mxu0 0.0
        %685 = vmatpush1.msra.mxu0 0.0
        %686 = vmatprep.subr.mxu0 0.0
        %687 = vmatpush1.msra.mxu0 0.0
        %688 = vmatprep.subr.mxu0 0.0
        %689 = vmatpush1.msra.mxu0 0.0
        %690 = vmatprep.subr.mxu0 0.0
        %691 = vmatpush1.msra.mxu0 0.0
        %692 = vmatprep.subr.mxu0 0.0
        %693 = vmatpush1.msra.mxu0 0.0
        %694 = vmatprep.subr.mxu0 0.0
        %695 = vmatpush1.msra.mxu0 0.0
        %696 = vmatprep.subr.mxu0 0.0
        %697 = vmatpush1.msra.mxu0 0.0
        %698 = vmatprep.subr.mxu0 0.0
        %699 = vmatpush1.msra.mxu0 0.0
        %700 = vmatprep.subr.mxu0 0.0
        %701 = vmatpush1.msra.mxu0 0.0
        %702 = vmatprep.subr.mxu0 0.0
        %703 = vmatpush1.msra.mxu0 0.0
        %704 = vmatprep.subr.mxu0 %v670
        %705 = vmatpush1.msra.mxu0 %v668
        %706 = vmatprep.subr.mxu0 0.0
        %707 = vmatpush2.msra.mxu0 0.0
        %708 = vmatprep.subr.mxu0 0.0
        %709 = vmatpush2.msra.mxu0 0.0
        %710 = vmatprep.subr.mxu0 0.0
        %711 = vmatpush2.msra.mxu0 0.0
        %712 = vmatprep.subr.mxu0 0.0
        %713 = vmatpush2.msra.mxu0 0.0
        %714 = vmatprep.subr.mxu0 0.0
        %715 = vmatpush2.msra.mxu0 0.0
        %716 = vmatprep.subr.mxu0 0.0
        %717 = vmatpush2.msra.mxu0 0.0
        %718 = vmatprep.subr.mxu0 0.0
        %719 = vmatpush2.msra.mxu0 0.0
        %720 = vmatprep.subr.mxu0 0.0
        %721 = vmatpush2.msra.mxu0 0.0
        %722 = vmatprep.subr.mxu0 0.0
        %723 = vmatpush2.msra.mxu0 0.0
        %724 = vmatprep.subr.mxu0 0.0
        %725 = vmatpush2.msra.mxu0 0.0
        %726 = vmatprep.subr.mxu0 0.0
        %727 = vmatpush2.msra.mxu0 0.0
        %728 = vmatprep.subr.mxu0 0.0
        %729 = vmatpush2.msra.mxu0 0.0
        %730 = vmatprep.subr.mxu0 0.0
        %731 = vmatpush2.msra.mxu0 0.0
        %732 = vmatprep.subr.mxu0 0.0
        %733 = vmatpush2.msra.mxu0 0.0
        %734 = vmatprep.subr.mxu0 0.0
        %735 = vmatpush2.msra.mxu0 0.0
        %736 = vmatprep.subr.mxu0 0.0
        %737 = vmatpush2.msra.mxu0 0.0
        %738 = vmatprep.mubr.f32.mxu0 0.0
        %739 = vmatmul.mubr.f32.gmra.mxu0 %v666
        %v740 = vpop.f32.mrf.mxu0
        %v741 = vadd.f32 0.0, %v740
        %v742 = vpop.f32.mrf.mxu0
        %v743 = vadd.f32 0.0, %v742
        %744 = vdwg.mxu0
        %745 = vmatprep.subr.mxu0 0.0
        %746 = vmatpush1.msra.mxu0 0.0
        %747 = vmatprep.subr.mxu0 0.0
        %748 = vmatpush1.msra.mxu0 0.0
        %749 = vmatprep.subr.mxu0 0.0
        %750 = vmatpush1.msra.mxu0 0.0
        %751 = vmatprep.subr.mxu0 0.0
        %752 = vmatpush1.msra.mxu0 0.0
        %753 = vmatprep.subr.mxu0 0.0
        %754 = vmatpush1.msra.mxu0 0.0
        %755 = vmatprep.subr.mxu0 0.0
        %756 = vmatpush1.msra.mxu0 0.0
        %757 = vmatprep.subr.mxu0 0.0
        %758 = vmatpush1.msra.mxu0 0.0
        %759 = vmatprep.subr.mxu0 0.0
        %760 = vmatpush1.msra.mxu0 0.0
        %761 = vmatprep.subr.mxu0 0.0
        %762 = vmatpush1.msra.mxu0 0.0
        %763 = vmatprep.subr.mxu0 0.0
        %764 = vmatpush1.msra.mxu0 0.0
        %765 = vmatprep.subr.mxu0 0.0
        %766 = vmatpush1.msra.mxu0 0.0
        %767 = vmatprep.subr.mxu0 0.0
        %768 = vmatpush1.msra.mxu0 0.0
        %769 = vmatprep.subr.mxu0 0.0
        %770 = vmatpush1.msra.mxu0 0.0
        %771 = vmatprep.subr.mxu0 0.0
        %772 = vmatpush1.msra.mxu0 0.0
        %773 = vmatprep.subr.mxu0 0.0
        %774 = vmatpush1.msra.mxu0 0.0
        %775 = vmatprep.subr.mxu0 0.0
        %776 = vmatpush1.msra.mxu0 %v672
        %777 = vmatprep.subr.mxu0 0.0
        %778 = vmatpush2.msra.mxu0 0.0
        %779 = vmatprep.subr.mxu0 0.0
        %780 = vmatpush2.msra.mxu0 0.0
        %781 = vmatprep.subr.mxu0 0.0
        %782 = vmatpush2.msra.mxu0 0.0
        %783 = vmatprep.subr.mxu0 0.0
        %784 = vmatpush2.msra.mxu0 0.0
        %785 = vmatprep.subr.mxu0 0.0
        %786 = vmatpush2.msra.mxu0 0.0
        %787 = vmatprep.subr.mxu0 0.0
        %788 = vmatpush2.msra.mxu0 0.0
        %789 = vmatprep.subr.mxu0 0.0
        %790 = vmatpush2.msra.mxu0 0.0
        %791 = vmatprep.subr.mxu0 0.0
        %792 = vmatpush2.msra.mxu0 0.0
        %793 = vmatprep.subr.mxu0 0.0
        %794 = vmatpush2.msra.mxu0 0.0
        %795 = vmatprep.subr.mxu0 0.0
        %796 = vmatpush2.msra.mxu0 0.0
        %797 = vmatprep.subr.mxu0 0.0
        %798 = vmatpush2.msra.mxu0 0.0
        %799 = vmatprep.subr.mxu0 0.0
        %800 = vmatpush2.msra.mxu0 0.0
        %801 = vmatprep.subr.mxu0 0.0
        %802 = vmatpush2.msra.mxu0 0.0
        %803 = vmatprep.subr.mxu0 0.0
        %804 = vmatpush2.msra.mxu0 0.0
        %805 = vmatprep.subr.mxu0 0.0
        %806 = vmatpush2.msra.mxu0 0.0
        %807 = vmatprep.subr.mxu0 0.0
        %808 = vmatpush2.msra.mxu0 0.0
        %809 = vmatprep.mubr.f32.mxu0 0.0
        %810 = vmatmul.mubr.f32.gmra.mxu0 %v666
        %v811 = vpop.f32.mrf.mxu0
        %v812 = vadd.f32 0.0, %v811
        %v813 = vpop.f32.mrf.mxu0
        %814 = vdwg.mxu0
        %v815 = vadd.f32 %v653, %v741
        %v816 = vadd.f32 %v654, %v743
        %v817 = vadd.f32 %v655, %v812
        %818 = vrot.lane.b32.xlu0 %v169, 109
        %v819 = vpop.permute.xlu0 %818
        %820 = vrot.lane.b32.xlu0 %v182, 109
        %v821 = vpop.permute.xlu0 %820
        %822 = vrot.lane.b32.xlu0 %v170, 109
        %v823 = vpop.permute.xlu0 %822
        %vm824 = vcmask 891904
        %v825 = vsel %vm824, %v819, %v821
        %v826 = vsel %vm824, %v821, %v823
        %v828 = vsel %vm192, %v175, 0
        %v830 = vsel %vm196, %v825, 0
        %v832 = vsel %vm196, %v826, 0
        %v834 = vsel %vm196, %v823, 0
        %836 = vmatprep.subr.mxu0 0.0
        %837 = vmatpush1.msra.mxu0 0.0
        %838 = vmatprep.subr.mxu0 0.0
        %839 = vmatpush1.msra.mxu0 0.0
        %840 = vmatprep.subr.mxu0 0.0
        %841 = vmatpush1.msra.mxu0 0.0
        %842 = vmatprep.subr.mxu0 0.0
        %843 = vmatpush1.msra.mxu0 0.0
        %844 = vmatprep.subr.mxu0 0.0
        %845 = vmatpush1.msra.mxu0 0.0
        %846 = vmatprep.subr.mxu0 0.0
        %847 = vmatpush1.msra.mxu0 0.0
        %848 = vmatprep.subr.mxu0 0.0
        %849 = vmatpush1.msra.mxu0 0.0
        %850 = vmatprep.subr.mxu0 0.0
        %851 = vmatpush1.msra.mxu0 0.0
        %852 = vmatprep.subr.mxu0 0.0
        %853 = vmatpush1.msra.mxu0 0.0
        %854 = vmatprep.subr.mxu0 0.0
        %855 = vmatpush1.msra.mxu0 0.0
        %856 = vmatprep.subr.mxu0 0.0
        %857 = vmatpush1.msra.mxu0 0.0
        %858 = vmatprep.subr.mxu0 0.0
        %859 = vmatpush1.msra.mxu0 0.0
        %860 = vmatprep.subr.mxu0 0.0
        %861 = vmatpush1.msra.mxu0 0.0
        %862 = vmatprep.subr.mxu0 0.0
        %863 = vmatpush1.msra.mxu0 0.0
        %864 = vmatprep.subr.mxu0 0.0
        %865 = vmatpush1.msra.mxu0 0.0
        %866 = vmatprep.subr.mxu0 %v832
        %867 = vmatpush1.msra.mxu0 %v830
        %868 = vmatprep.subr.mxu0 0.0
        %869 = vmatpush2.msra.mxu0 0.0
        %870 = vmatprep.subr.mxu0 0.0
        %871 = vmatpush2.msra.mxu0 0.0
        %872 = vmatprep.subr.mxu0 0.0
        %873 = vmatpush2.msra.mxu0 0.0
        %874 = vmatprep.subr.mxu0 0.0
        %875 = vmatpush2.msra.mxu0 0.0
        %876 = vmatprep.subr.mxu0 0.0
        %877 = vmatpush2.msra.mxu0 0.0
        %878 = vmatprep.subr.mxu0 0.0
        %879 = vmatpush2.msra.mxu0 0.0
        %880 = vmatprep.subr.mxu0 0.0
        %881 = vmatpush2.msra.mxu0 0.0
        %882 = vmatprep.subr.mxu0 0.0
        %883 = vmatpush2.msra.mxu0 0.0
        %884 = vmatprep.subr.mxu0 0.0
        %885 = vmatpush2.msra.mxu0 0.0
        %886 = vmatprep.subr.mxu0 0.0
        %887 = vmatpush2.msra.mxu0 0.0
        %888 = vmatprep.subr.mxu0 0.0
        %889 = vmatpush2.msra.mxu0 0.0
        %890 = vmatprep.subr.mxu0 0.0
        %891 = vmatpush2.msra.mxu0 0.0
        %892 = vmatprep.subr.mxu0 0.0
        %893 = vmatpush2.msra.mxu0 0.0
        %894 = vmatprep.subr.mxu0 0.0
        %895 = vmatpush2.msra.mxu0 0.0
        %896 = vmatprep.subr.mxu0 0.0
        %897 = vmatpush2.msra.mxu0 0.0
        %898 = vmatprep.subr.mxu0 0.0
        %899 = vmatpush2.msra.mxu0 0.0
        %900 = vmatprep.mubr.f32.mxu0 0.0
        %901 = vmatmul.mubr.f32.gmra.mxu0 %v828
        %v902 = vpop.f32.mrf.mxu0
        %v903 = vadd.f32 0.0, %v902
        %v904 = vpop.f32.mrf.mxu0
        %v905 = vadd.f32 0.0, %v904
        %906 = vdwg.mxu0
        %907 = vmatprep.subr.mxu0 0.0
        %908 = vmatpush1.msra.mxu0 0.0
        %909 = vmatprep.subr.mxu0 0.0
        %910 = vmatpush1.msra.mxu0 0.0
        %911 = vmatprep.subr.mxu0 0.0
        %912 = vmatpush1.msra.mxu0 0.0
        %913 = vmatprep.subr.mxu0 0.0
        %914 = vmatpush1.msra.mxu0 0.0
        %915 = vmatprep.subr.mxu0 0.0
        %916 = vmatpush1.msra.mxu0 0.0
        %917 = vmatprep.subr.mxu0 0.0
        %918 = vmatpush1.msra.mxu0 0.0
        %919 = vmatprep.subr.mxu0 0.0
        %920 = vmatpush1.msra.mxu0 0.0
        %921 = vmatprep.subr.mxu0 0.0
        %922 = vmatpush1.msra.mxu0 0.0
        %923 = vmatprep.subr.mxu0 0.0
        %924 = vmatpush1.msra.mxu0 0.0
        %925 = vmatprep.subr.mxu0 0.0
        %926 = vmatpush1.msra.mxu0 0.0
        %927 = vmatprep.subr.mxu0 0.0
        %928 = vmatpush1.msra.mxu0 0.0
        %929 = vmatprep.subr.mxu0 0.0
        %930 = vmatpush1.msra.mxu0 0.0
        %931 = vmatprep.subr.mxu0 0.0
        %932 = vmatpush1.msra.mxu0 0.0
        %933 = vmatprep.subr.mxu0 0.0
        %934 = vmatpush1.msra.mxu0 0.0
        %935 = vmatprep.subr.mxu0 0.0
        %936 = vmatpush1.msra.mxu0 0.0
        %937 = vmatprep.subr.mxu0 0.0
        %938 = vmatpush1.msra.mxu0 %v834
        %939 = vmatprep.subr.mxu0 0.0
        %940 = vmatpush2.msra.mxu0 0.0
        %941 = vmatprep.subr.mxu0 0.0
        %942 = vmatpush2.msra.mxu0 0.0
        %943 = vmatprep.subr.mxu0 0.0
        %944 = vmatpush2.msra.mxu0 0.0
        %945 = vmatprep.subr.mxu0 0.0
        %946 = vmatpush2.msra.mxu0 0.0
        %947 = vmatprep.subr.mxu0 0.0
        %948 = vmatpush2.msra.mxu0 0.0
        %949 = vmatprep.subr.mxu0 0.0
        %950 = vmatpush2.msra.mxu0 0.0
        %951 = vmatprep.subr.mxu0 0.0
        %952 = vmatpush2.msra.mxu0 0.0
        %953 = vmatprep.subr.mxu0 0.0
        %954 = vmatpush2.msra.mxu0 0.0
        %955 = vmatprep.subr.mxu0 0.0
        %956 = vmatpush2.msra.mxu0 0.0
        %957 = vmatprep.subr.mxu0 0.0
        %958 = vmatpush2.msra.mxu0 0.0
        %959 = vmatprep.subr.mxu0 0.0
        %960 = vmatpush2.msra.mxu0 0.0
        %961 = vmatprep.subr.mxu0 0.0
        %962 = vmatpush2.msra.mxu0 0.0
        %963 = vmatprep.subr.mxu0 0.0
        %964 = vmatpush2.msra.mxu0 0.0
        %965 = vmatprep.subr.mxu0 0.0
        %966 = vmatpush2.msra.mxu0 0.0
        %967 = vmatprep.subr.mxu0 0.0
        %968 = vmatpush2.msra.mxu0 0.0
        %969 = vmatprep.subr.mxu0 0.0
        %970 = vmatpush2.msra.mxu0 0.0
        %971 = vmatprep.mubr.f32.mxu0 0.0
        %972 = vmatmul.mubr.f32.gmra.mxu0 %v828
        %v973 = vpop.f32.mrf.mxu0
        %v974 = vadd.f32 0.0, %v973
        %v975 = vpop.f32.mrf.mxu0
        %976 = vdwg.mxu0
        %v977 = vadd.f32 %v815, %v903
        %v978 = vadd.f32 %v816, %v905
        %v979 = vadd.f32 %v817, %v974
        %980 = vrot.lane.b32.xlu0 %v169, 108
        %v981 = vpop.permute.xlu0 %980
        %982 = vrot.lane.b32.xlu0 %v182, 108
        %v983 = vpop.permute.xlu0 %982
        %984 = vrot.lane.b32.xlu0 %v170, 108
        %v985 = vpop.permute.xlu0 %984
        %vm986 = vcmask 883712
        %v987 = vsel %vm986, %v981, %v983
        %v988 = vsel %vm986, %v983, %v985
        %v990 = vsel %vm192, %v176, 0
        %v992 = vsel %vm196, %v987, 0
        %v994 = vsel %vm196, %v988, 0
        %v996 = vsel %vm196, %v985, 0
        %998 = vmatprep.subr.mxu0 0.0
        %999 = vmatpush1.msra.mxu0 0.0
        %1000 = vmatprep.subr.mxu0 0.0
        %1001 = vmatpush1.msra.mxu0 0.0
        %1002 = vmatprep.subr.mxu0 0.0
        %1003 = vmatpush1.msra.mxu0 0.0
        %1004 = vmatprep.subr.mxu0 0.0
        %1005 = vmatpush1.msra.mxu0 0.0
        %1006 = vmatprep.subr.mxu0 0.0
        %1007 = vmatpush1.msra.mxu0 0.0
        %1008 = vmatprep.subr.mxu0 0.0
        %1009 = vmatpush1.msra.mxu0 0.0
        %1010 = vmatprep.subr.mxu0 0.0
        %1011 = vmatpush1.msra.mxu0 0.0
        %1012 = vmatprep.subr.mxu0 0.0
        %1013 = vmatpush1.msra.mxu0 0.0
        %1014 = vmatprep.subr.mxu0 0.0
        %1015 = vmatpush1.msra.mxu0 0.0
        %1016 = vmatprep.subr.mxu0 0.0
        %1017 = vmatpush1.msra.mxu0 0.0
        %1018 = vmatprep.subr.mxu0 0.0
        %1019 = vmatpush1.msra.mxu0 0.0
        %1020 = vmatprep.subr.mxu0 0.0
        %1021 = vmatpush1.msra.mxu0 0.0
        %1022 = vmatprep.subr.mxu0 0.0
        %1023 = vmatpush1.msra.mxu0 0.0
        %1024 = vmatprep.subr.mxu0 0.0
        %1025 = vmatpush1.msra.mxu0 0.0
        %1026 = vmatprep.subr.mxu0 0.0
        %1027 = vmatpush1.msra.mxu0 0.0
        %1028 = vmatprep.subr.mxu0 %v994
        %1029 = vmatpush1.msra.mxu0 %v992
        %1030 = vmatprep.subr.mxu0 0.0
        %1031 = vmatpush2.msra.mxu0 0.0
        %1032 = vmatprep.subr.mxu0 0.0
        %1033 = vmatpush2.msra.mxu0 0.0
        %1034 = vmatprep.subr.mxu0 0.0
        %1035 = vmatpush2.msra.mxu0 0.0
        %1036 = vmatprep.subr.mxu0 0.0
        %1037 = vmatpush2.msra.mxu0 0.0
        %1038 = vmatprep.subr.mxu0 0.0
        %1039 = vmatpush2.msra.mxu0 0.0
        %1040 = vmatprep.subr.mxu0 0.0
        %1041 = vmatpush2.msra.mxu0 0.0
        %1042 = vmatprep.subr.mxu0 0.0
        %1043 = vmatpush2.msra.mxu0 0.0
        %1044 = vmatprep.subr.mxu0 0.0
        %1045 = vmatpush2.msra.mxu0 0.0
        %1046 = vmatprep.subr.mxu0 0.0
        %1047 = vmatpush2.msra.mxu0 0.0
        %1048 = vmatprep.subr.mxu0 0.0
        %1049 = vmatpush2.msra.mxu0 0.0
        %1050 = vmatprep.subr.mxu0 0.0
        %1051 = vmatpush2.msra.mxu0 0.0
        %1052 = vmatprep.subr.mxu0 0.0
        %1053 = vmatpush2.msra.mxu0 0.0
        %1054 = vmatprep.subr.mxu0 0.0
        %1055 = vmatpush2.msra.mxu0 0.0
        %1056 = vmatprep.subr.mxu0 0.0
        %1057 = vmatpush2.msra.mxu0 0.0
        %1058 = vmatprep.subr.mxu0 0.0
        %1059 = vmatpush2.msra.mxu0 0.0
        %1060 = vmatprep.subr.mxu0 0.0
        %1061 = vmatpush2.msra.mxu0 0.0
        %1062 = vmatprep.mubr.f32.mxu0 0.0
        %1063 = vmatmul.mubr.f32.gmra.mxu0 %v990
        %v1064 = vpop.f32.mrf.mxu0
        %v1065 = vadd.f32 0.0, %v1064
        %v1066 = vpop.f32.mrf.mxu0
        %v1067 = vadd.f32 0.0, %v1066
        %1068 = vdwg.mxu0
        %1069 = vmatprep.subr.mxu0 0.0
        %1070 = vmatpush1.msra.mxu0 0.0
        %1071 = vmatprep.subr.mxu0 0.0
        %1072 = vmatpush1.msra.mxu0 0.0
        %1073 = vmatprep.subr.mxu0 0.0
        %1074 = vmatpush1.msra.mxu0 0.0
        %1075 = vmatprep.subr.mxu0 0.0
        %1076 = vmatpush1.msra.mxu0 0.0
        %1077 = vmatprep.subr.mxu0 0.0
        %1078 = vmatpush1.msra.mxu0 0.0
        %1079 = vmatprep.subr.mxu0 0.0
        %1080 = vmatpush1.msra.mxu0 0.0
        %1081 = vmatprep.subr.mxu0 0.0
        %1082 = vmatpush1.msra.mxu0 0.0
        %1083 = vmatprep.subr.mxu0 0.0
        %1084 = vmatpush1.msra.mxu0 0.0
        %1085 = vmatprep.subr.mxu0 0.0
        %1086 = vmatpush1.msra.mxu0 0.0
        %1087 = vmatprep.subr.mxu0 0.0
        %1088 = vmatpush1.msra.mxu0 0.0
        %1089 = vmatprep.subr.mxu0 0.0
        %1090 = vmatpush1.msra.mxu0 0.0
        %1091 = vmatprep.subr.mxu0 0.0
        %1092 = vmatpush1.msra.mxu0 0.0
        %1093 = vmatprep.subr.mxu0 0.0
        %1094 = vmatpush1.msra.mxu0 0.0
        %1095 = vmatprep.subr.mxu0 0.0
        %1096 = vmatpush1.msra.mxu0 0.0
        %1097 = vmatprep.subr.mxu0 0.0
        %1098 = vmatpush1.msra.mxu0 0.0
        %1099 = vmatprep.subr.mxu0 0.0
        %1100 = vmatpush1.msra.mxu0 %v996
        %1101 = vmatprep.subr.mxu0 0.0
        %1102 = vmatpush2.msra.mxu0 0.0
        %1103 = vmatprep.subr.mxu0 0.0
        %1104 = vmatpush2.msra.mxu0 0.0
        %1105 = vmatprep.subr.mxu0 0.0
        %1106 = vmatpush2.msra.mxu0 0.0
        %1107 = vmatprep.subr.mxu0 0.0
        %1108 = vmatpush2.msra.mxu0 0.0
        %1109 = vmatprep.subr.mxu0 0.0
        %1110 = vmatpush2.msra.mxu0 0.0
        %1111 = vmatprep.subr.mxu0 0.0
        %1112 = vmatpush2.msra.mxu0 0.0
        %1113 = vmatprep.subr.mxu0 0.0
        %1114 = vmatpush2.msra.mxu0 0.0
        %1115 = vmatprep.subr.mxu0 0.0
        %1116 = vmatpush2.msra.mxu0 0.0
        %1117 = vmatprep.subr.mxu0 0.0
        %1118 = vmatpush2.msra.mxu0 0.0
        %1119 = vmatprep.subr.mxu0 0.0
        %1120 = vmatpush2.msra.mxu0 0.0
        %1121 = vmatprep.subr.mxu0 0.0
        %1122 = vmatpush2.msra.mxu0 0.0
        %1123 = vmatprep.subr.mxu0 0.0
        %1124 = vmatpush2.msra.mxu0 0.0
        %1125 = vmatprep.subr.mxu0 0.0
        %1126 = vmatpush2.msra.mxu0 0.0
        %1127 = vmatprep.subr.mxu0 0.0
        %1128 = vmatpush2.msra.mxu0 0.0
        %1129 = vmatprep.subr.mxu0 0.0
        %1130 = vmatpush2.msra.mxu0 0.0
        %1131 = vmatprep.subr.mxu0 0.0
        %1132 = vmatpush2.msra.mxu0 0.0
        %1133 = vmatprep.mubr.f32.mxu0 0.0
        %1134 = vmatmul.mubr.f32.gmra.mxu0 %v990
        %v1135 = vpop.f32.mrf.mxu0
        %v1136 = vadd.f32 0.0, %v1135
        %v1137 = vpop.f32.mrf.mxu0
        %1138 = vdwg.mxu0
        %v1139 = vadd.f32 %v977, %v1065
        %v1140 = vadd.f32 %v978, %v1067
        %v1141 = vadd.f32 %v979, %v1136
        %1142 = vrot.lane.b32.xlu0 %v169, 92
        %v1143 = vpop.permute.xlu0 %1142
        %1144 = vrot.lane.b32.xlu0 %v182, 92
        %v1145 = vpop.permute.xlu0 %1144
        %1146 = vrot.lane.b32.xlu0 %v170, 92
        %v1147 = vpop.permute.xlu0 %1146
        %vm1148 = vcmask 752640
        %v1149 = vsel %vm1148, %v1143, %v1145
        %v1150 = vsel %vm1148, %v1145, %v1147
        %v1152 = vsel %vm192, %v177, 0
        %v1154 = vsel %vm196, %v1149, 0
        %v1156 = vsel %vm196, %v1150, 0
        %v1158 = vsel %vm196, %v1147, 0
        %1160 = vmatprep.subr.mxu0 0.0
        %1161 = vmatpush1.msra.mxu0 0.0
        %1162 = vmatprep.subr.mxu0 0.0
        %1163 = vmatpush1.msra.mxu0 0.0
        %1164 = vmatprep.subr.mxu0 0.0
        %1165 = vmatpush1.msra.mxu0 0.0
        %1166 = vmatprep.subr.mxu0 0.0
        %1167 = vmatpush1.msra.mxu0 0.0
        %1168 = vmatprep.subr.mxu0 0.0
        %1169 = vmatpush1.msra.mxu0 0.0
        %1170 = vmatprep.subr.mxu0 0.0
        %1171 = vmatpush1.msra.mxu0 0.0
        %1172 = vmatprep.subr.mxu0 0.0
        %1173 = vmatpush1.msra.mxu0 0.0
        %1174 = vmatprep.subr.mxu0 0.0
        %1175 = vmatpush1.msra.mxu0 0.0
        %1176 = vmatprep.subr.mxu0 0.0
        %1177 = vmatpush1.msra.mxu0 0.0
        %1178 = vmatprep.subr.mxu0 0.0
        %1179 = vmatpush1.msra.mxu0 0.0
        %1180 = vmatprep.subr.mxu0 0.0
        %1181 = vmatpush1.msra.mxu0 0.0
        %1182 = vmatprep.subr.mxu0 0.0
        %1183 = vmatpush1.msra.mxu0 0.0
        %1184 = vmatprep.subr.mxu0 0.0
        %1185 = vmatpush1.msra.mxu0 0.0
        %1186 = vmatprep.subr.mxu0 0.0
        %1187 = vmatpush1.msra.mxu0 0.0
        %1188 = vmatprep.subr.mxu0 0.0
        %1189 = vmatpush1.msra.mxu0 0.0
        %1190 = vmatprep.subr.mxu0 %v1156
        %1191 = vmatpush1.msra.mxu0 %v1154
        %1192 = vmatprep.subr.mxu0 0.0
        %1193 = vmatpush2.msra.mxu0 0.0
        %1194 = vmatprep.subr.mxu0 0.0
        %1195 = vmatpush2.msra.mxu0 0.0
        %1196 = vmatprep.subr.mxu0 0.0
        %1197 = vmatpush2.msra.mxu0 0.0
        %1198 = vmatprep.subr.mxu0 0.0
        %1199 = vmatpush2.msra.mxu0 0.0
        %1200 = vmatprep.subr.mxu0 0.0
        %1201 = vmatpush2.msra.mxu0 0.0
        %1202 = vmatprep.subr.mxu0 0.0
        %1203 = vmatpush2.msra.mxu0 0.0
        %1204 = vmatprep.subr.mxu0 0.0
        %1205 = vmatpush2.msra.mxu0 0.0
        %1206 = vmatprep.subr.mxu0 0.0
        %1207 = vmatpush2.msra.mxu0 0.0
        %1208 = vmatprep.subr.mxu0 0.0
        %1209 = vmatpush2.msra.mxu0 0.0
        %1210 = vmatprep.subr.mxu0 0.0
        %1211 = vmatpush2.msra.mxu0 0.0
        %1212 = vmatprep.subr.mxu0 0.0
        %1213 = vmatpush2.msra.mxu0 0.0
        %1214 = vmatprep.subr.mxu0 0.0
        %1215 = vmatpush2.msra.mxu0 0.0
        %1216 = vmatprep.subr.mxu0 0.0
        %1217 = vmatpush2.msra.mxu0 0.0
        %1218 = vmatprep.subr.mxu0 0.0
        %1219 = vmatpush2.msra.mxu0 0.0
        %1220 = vmatprep.subr.mxu0 0.0
        %1221 = vmatpush2.msra.mxu0 0.0
        %1222 = vmatprep.subr.mxu0 0.0
        %1223 = vmatpush2.msra.mxu0 0.0
        %1224 = vmatprep.mubr.f32.mxu0 0.0
        %1225 = vmatmul.mubr.f32.gmra.mxu0 %v1152
        %v1226 = vpop.f32.mrf.mxu0
        %v1227 = vadd.f32 0.0, %v1226
        %v1228 = vpop.f32.mrf.mxu0
        %v1229 = vadd.f32 0.0, %v1228
        %1230 = vdwg.mxu0
        %1231 = vmatprep.subr.mxu0 0.0
        %1232 = vmatpush1.msra.mxu0 0.0
        %1233 = vmatprep.subr.mxu0 0.0
        %1234 = vmatpush1.msra.mxu0 0.0
        %1235 = vmatprep.subr.mxu0 0.0
        %1236 = vmatpush1.msra.mxu0 0.0
        %1237 = vmatprep.subr.mxu0 0.0
        %1238 = vmatpush1.msra.mxu0 0.0
        %1239 = vmatprep.subr.mxu0 0.0
        %1240 = vmatpush1.msra.mxu0 0.0
        %1241 = vmatprep.subr.mxu0 0.0
        %1242 = vmatpush1.msra.mxu0 0.0
        %1243 = vmatprep.subr.mxu0 0.0
        %1244 = vmatpush1.msra.mxu0 0.0
        %1245 = vmatprep.subr.mxu0 0.0
        %1246 = vmatpush1.msra.mxu0 0.0
        %1247 = vmatprep.subr.mxu0 0.0
        %1248 = vmatpush1.msra.mxu0 0.0
        %1249 = vmatprep.subr.mxu0 0.0
        %1250 = vmatpush1.msra.mxu0 0.0
        %1251 = vmatprep.subr.mxu0 0.0
        %1252 = vmatpush1.msra.mxu0 0.0
        %1253 = vmatprep.subr.mxu0 0.0
        %1254 = vmatpush1.msra.mxu0 0.0
        %1255 = vmatprep.subr.mxu0 0.0
        %1256 = vmatpush1.msra.mxu0 0.0
        %1257 = vmatprep.subr.mxu0 0.0
        %1258 = vmatpush1.msra.mxu0 0.0
        %1259 = vmatprep.subr.mxu0 0.0
        %1260 = vmatpush1.msra.mxu0 0.0
        %1261 = vmatprep.subr.mxu0 0.0
        %1262 = vmatpush1.msra.mxu0 %v1158
        %1263 = vmatprep.subr.mxu0 0.0
        %1264 = vmatpush2.msra.mxu0 0.0
        %1265 = vmatprep.subr.mxu0 0.0
        %1266 = vmatpush2.msra.mxu0 0.0
        %1267 = vmatprep.subr.mxu0 0.0
        %1268 = vmatpush2.msra.mxu0 0.0
        %1269 = vmatprep.subr.mxu0 0.0
        %1270 = vmatpush2.msra.mxu0 0.0
        %1271 = vmatprep.subr.mxu0 0.0
        %1272 = vmatpush2.msra.mxu0 0.0
        %1273 = vmatprep.subr.mxu0 0.0
        %1274 = vmatpush2.msra.mxu0 0.0
        %1275 = vmatprep.subr.mxu0 0.0
        %1276 = vmatpush2.msra.mxu0 0.0
        %1277 = vmatprep.subr.mxu0 0.0
        %1278 = vmatpush2.msra.mxu0 0.0
        %1279 = vmatprep.subr.mxu0 0.0
        %1280 = vmatpush2.msra.mxu0 0.0
        %1281 = vmatprep.subr.mxu0 0.0
        %1282 = vmatpush2.msra.mxu0 0.0
        %1283 = vmatprep.subr.mxu0 0.0
        %1284 = vmatpush2.msra.mxu0 0.0
        %1285 = vmatprep.subr.mxu0 0.0
        %1286 = vmatpush2.msra.mxu0 0.0
        %1287 = vmatprep.subr.mxu0 0.0
        %1288 = vmatpush2.msra.mxu0 0.0
        %1289 = vmatprep.subr.mxu0 0.0
        %1290 = vmatpush2.msra.mxu0 0.0
        %1291 = vmatprep.subr.mxu0 0.0
        %1292 = vmatpush2.msra.mxu0 0.0
        %1293 = vmatprep.subr.mxu0 0.0
        %1294 = vmatpush2.msra.mxu0 0.0
        %1295 = vmatprep.mubr.f32.mxu0 0.0
        %1296 = vmatmul.mubr.f32.gmra.mxu0 %v1152
        %v1297 = vpop.f32.mrf.mxu0
        %v1298 = vadd.f32 0.0, %v1297
        %v1299 = vpop.f32.mrf.mxu0
        %1300 = vdwg.mxu0
        %v1301 = vadd.f32 %v1139, %v1227
        %v1302 = vadd.f32 %v1140, %v1229
        %v1303 = vadd.f32 %v1141, %v1298
        %1304 = vrot.lane.b32.xlu0 %v169, 91
        %v1305 = vpop.permute.xlu0 %1304
        %1306 = vrot.lane.b32.xlu0 %v182, 91
        %v1307 = vpop.permute.xlu0 %1306
        %1308 = vrot.lane.b32.xlu0 %v170, 91
        %v1309 = vpop.permute.xlu0 %1308
        %vm1310 = vcmask 744448
        %v1311 = vsel %vm1310, %v1305, %v1307
        %v1312 = vsel %vm1310, %v1307, %v1309
        %v1314 = vsel %vm192, %v178, 0
        %v1316 = vsel %vm196, %v1311, 0
        %v1318 = vsel %vm196, %v1312, 0
        %v1320 = vsel %vm196, %v1309, 0
        %1322 = vmatprep.subr.mxu0 0.0
        %1323 = vmatpush1.msra.mxu0 0.0
        %1324 = vmatprep.subr.mxu0 0.0
        %1325 = vmatpush1.msra.mxu0 0.0
        %1326 = vmatprep.subr.mxu0 0.0
        %1327 = vmatpush1.msra.mxu0 0.0
        %1328 = vmatprep.subr.mxu0 0.0
        %1329 = vmatpush1.msra.mxu0 0.0
        %1330 = vmatprep.subr.mxu0 0.0
        %1331 = vmatpush1.msra.mxu0 0.0
        %1332 = vmatprep.subr.mxu0 0.0
        %1333 = vmatpush1.msra.mxu0 0.0
        %1334 = vmatprep.subr.mxu0 0.0
        %1335 = vmatpush1.msra.mxu0 0.0
        %1336 = vmatprep.subr.mxu0 0.0
        %1337 = vmatpush1.msra.mxu0 0.0
        %1338 = vmatprep.subr.mxu0 0.0
        %1339 = vmatpush1.msra.mxu0 0.0
        %1340 = vmatprep.subr.mxu0 0.0
        %1341 = vmatpush1.msra.mxu0 0.0
        %1342 = vmatprep.subr.mxu0 0.0
        %1343 = vmatpush1.msra.mxu0 0.0
        %1344 = vmatprep.subr.mxu0 0.0
        %1345 = vmatpush1.msra.mxu0 0.0
        %1346 = vmatprep.subr.mxu0 0.0
        %1347 = vmatpush1.msra.mxu0 0.0
        %1348 = vmatprep.subr.mxu0 0.0
        %1349 = vmatpush1.msra.mxu0 0.0
        %1350 = vmatprep.subr.mxu0 0.0
        %1351 = vmatpush1.msra.mxu0 0.0
        %1352 = vmatprep.subr.mxu0 %v1318
        %1353 = vmatpush1.msra.mxu0 %v1316
        %1354 = vmatprep.subr.mxu0 0.0
        %1355 = vmatpush2.msra.mxu0 0.0
        %1356 = vmatprep.subr.mxu0 0.0
        %1357 = vmatpush2.msra.mxu0 0.0
        %1358 = vmatprep.subr.mxu0 0.0
        %1359 = vmatpush2.msra.mxu0 0.0
        %1360 = vmatprep.subr.mxu0 0.0
        %1361 = vmatpush2.msra.mxu0 0.0
        %1362 = vmatprep.subr.mxu0 0.0
        %1363 = vmatpush2.msra.mxu0 0.0
        %1364 = vmatprep.subr.mxu0 0.0
        %1365 = vmatpush2.msra.mxu0 0.0
        %1366 = vmatprep.subr.mxu0 0.0
        %1367 = vmatpush2.msra.mxu0 0.0
        %1368 = vmatprep.subr.mxu0 0.0
        %1369 = vmatpush2.msra.mxu0 0.0
        %1370 = vmatprep.subr.mxu0 0.0
        %1371 = vmatpush2.msra.mxu0 0.0
        %1372 = vmatprep.subr.mxu0 0.0
        %1373 = vmatpush2.msra.mxu0 0.0
        %1374 = vmatprep.subr.mxu0 0.0
        %1375 = vmatpush2.msra.mxu0 0.0
        %1376 = vmatprep.subr.mxu0 0.0
        %1377 = vmatpush2.msra.mxu0 0.0
        %1378 = vmatprep.subr.mxu0 0.0
        %1379 = vmatpush2.msra.mxu0 0.0
        %1380 = vmatprep.subr.mxu0 0.0
        %1381 = vmatpush2.msra.mxu0 0.0
        %1382 = vmatprep.subr.mxu0 0.0
        %1383 = vmatpush2.msra.mxu0 0.0
        %1384 = vmatprep.subr.mxu0 0.0
        %1385 = vmatpush2.msra.mxu0 0.0
        %1386 = vmatprep.mubr.f32.mxu0 0.0
        %1387 = vmatmul.mubr.f32.gmra.mxu0 %v1314
        %v1388 = vpop.f32.mrf.mxu0
        %v1389 = vadd.f32 0.0, %v1388
        %v1390 = vpop.f32.mrf.mxu0
        %v1391 = vadd.f32 0.0, %v1390
        %1392 = vdwg.mxu0
        %1393 = vmatprep.subr.mxu0 0.0
        %1394 = vmatpush1.msra.mxu0 0.0
        %1395 = vmatprep.subr.mxu0 0.0
        %1396 = vmatpush1.msra.mxu0 0.0
        %1397 = vmatprep.subr.mxu0 0.0
        %1398 = vmatpush1.msra.mxu0 0.0
        %1399 = vmatprep.subr.mxu0 0.0
        %1400 = vmatpush1.msra.mxu0 0.0
        %1401 = vmatprep.subr.mxu0 0.0
        %1402 = vmatpush1.msra.mxu0 0.0
        %1403 = vmatprep.subr.mxu0 0.0
        %1404 = vmatpush1.msra.mxu0 0.0
        %1405 = vmatprep.subr.mxu0 0.0
        %1406 = vmatpush1.msra.mxu0 0.0
        %1407 = vmatprep.subr.mxu0 0.0
        %1408 = vmatpush1.msra.mxu0 0.0
        %1409 = vmatprep.subr.mxu0 0.0
        %1410 = vmatpush1.msra.mxu0 0.0
        %1411 = vmatprep.subr.mxu0 0.0
        %1412 = vmatpush1.msra.mxu0 0.0
        %1413 = vmatprep.subr.mxu0 0.0
        %1414 = vmatpush1.msra.mxu0 0.0
        %1415 = vmatprep.subr.mxu0 0.0
        %1416 = vmatpush1.msra.mxu0 0.0
        %1417 = vmatprep.subr.mxu0 0.0
        %1418 = vmatpush1.msra.mxu0 0.0
        %1419 = vmatprep.subr.mxu0 0.0
        %1420 = vmatpush1.msra.mxu0 0.0
        %1421 = vmatprep.subr.mxu0 0.0
        %1422 = vmatpush1.msra.mxu0 0.0
        %1423 = vmatprep.subr.mxu0 0.0
        %1424 = vmatpush1.msra.mxu0 %v1320
        %1425 = vmatprep.subr.mxu0 0.0
        %1426 = vmatpush2.msra.mxu0 0.0
        %1427 = vmatprep.subr.mxu0 0.0
        %1428 = vmatpush2.msra.mxu0 0.0
        %1429 = vmatprep.subr.mxu0 0.0
        %1430 = vmatpush2.msra.mxu0 0.0
        %1431 = vmatprep.subr.mxu0 0.0
        %1432 = vmatpush2.msra.mxu0 0.0
        %1433 = vmatprep.subr.mxu0 0.0
        %1434 = vmatpush2.msra.mxu0 0.0
        %1435 = vmatprep.subr.mxu0 0.0
        %1436 = vmatpush2.msra.mxu0 0.0
        %1437 = vmatprep.subr.mxu0 0.0
        %1438 = vmatpush2.msra.mxu0 0.0
        %1439 = vmatprep.subr.mxu0 0.0
        %1440 = vmatpush2.msra.mxu0 0.0
        %1441 = vmatprep.subr.mxu0 0.0
        %1442 = vmatpush2.msra.mxu0 0.0
        %1443 = vmatprep.subr.mxu0 0.0
        %1444 = vmatpush2.msra.mxu0 0.0
        %1445 = vmatprep.subr.mxu0 0.0
        %1446 = vmatpush2.msra.mxu0 0.0
        %1447 = vmatprep.subr.mxu0 0.0
        %1448 = vmatpush2.msra.mxu0 0.0
        %1449 = vmatprep.subr.mxu0 0.0
        %1450 = vmatpush2.msra.mxu0 0.0
        %1451 = vmatprep.subr.mxu0 0.0
        %1452 = vmatpush2.msra.mxu0 0.0
        %1453 = vmatprep.subr.mxu0 0.0
        %1454 = vmatpush2.msra.mxu0 0.0
        %1455 = vmatprep.subr.mxu0 0.0
        %1456 = vmatpush2.msra.mxu0 0.0
        %1457 = vmatprep.mubr.f32.mxu0 0.0
        %1458 = vmatmul.mubr.f32.gmra.mxu0 %v1314
        %v1459 = vpop.f32.mrf.mxu0
        %v1460 = vadd.f32 0.0, %v1459
        %v1461 = vpop.f32.mrf.mxu0
        %1462 = vdwg.mxu0
        %v1463 = vadd.f32 %v1301, %v1389
        %v1464 = vadd.f32 %v1302, %v1391
        %v1465 = vadd.f32 %v1303, %v1460
        %1466 = vrot.lane.b32.xlu0 %v169, 90
        %v1467 = vpop.permute.xlu0 %1466
        %1468 = vrot.lane.b32.xlu0 %v182, 90
        %v1469 = vpop.permute.xlu0 %1468
        %1470 = vrot.lane.b32.xlu0 %v170, 90
        %v1471 = vpop.permute.xlu0 %1470
        %vm1472 = vcmask 736256
        %v1473 = vsel %vm1472, %v1467, %v1469
        %v1474 = vsel %vm1472, %v1469, %v1471
        %v1476 = vsel %vm192, %v179, 0
        %v1478 = vsel %vm196, %v1473, 0
        %v1480 = vsel %vm196, %v1474, 0
        %v1482 = vsel %vm196, %v1471, 0
        %1484 = vmatprep.subr.mxu0 0.0
        %1485 = vmatpush1.msra.mxu0 0.0
        %1486 = vmatprep.subr.mxu0 0.0
        %1487 = vmatpush1.msra.mxu0 0.0
        %1488 = vmatprep.subr.mxu0 0.0
        %1489 = vmatpush1.msra.mxu0 0.0
        %1490 = vmatprep.subr.mxu0 0.0
        %1491 = vmatpush1.msra.mxu0 0.0
        %1492 = vmatprep.subr.mxu0 0.0
        %1493 = vmatpush1.msra.mxu0 0.0
        %1494 = vmatprep.subr.mxu0 0.0
        %1495 = vmatpush1.msra.mxu0 0.0
        %1496 = vmatprep.subr.mxu0 0.0
        %1497 = vmatpush1.msra.mxu0 0.0
        %1498 = vmatprep.subr.mxu0 0.0
        %1499 = vmatpush1.msra.mxu0 0.0
        %1500 = vmatprep.subr.mxu0 0.0
        %1501 = vmatpush1.msra.mxu0 0.0
        %1502 = vmatprep.subr.mxu0 0.0
        %1503 = vmatpush1.msra.mxu0 0.0
        %1504 = vmatprep.subr.mxu0 0.0
        %1505 = vmatpush1.msra.mxu0 0.0
        %1506 = vmatprep.subr.mxu0 0.0
        %1507 = vmatpush1.msra.mxu0 0.0
        %1508 = vmatprep.subr.mxu0 0.0
        %1509 = vmatpush1.msra.mxu0 0.0
        %1510 = vmatprep.subr.mxu0 0.0
        %1511 = vmatpush1.msra.mxu0 0.0
        %1512 = vmatprep.subr.mxu0 0.0
        %1513 = vmatpush1.msra.mxu0 0.0
        %1514 = vmatprep.subr.mxu0 %v1480
        %1515 = vmatpush1.msra.mxu0 %v1478
        %1516 = vmatprep.subr.mxu0 0.0
        %1517 = vmatpush2.msra.mxu0 0.0
        %1518 = vmatprep.subr.mxu0 0.0
        %1519 = vmatpush2.msra.mxu0 0.0
        %1520 = vmatprep.subr.mxu0 0.0
        %1521 = vmatpush2.msra.mxu0 0.0
        %1522 = vmatprep.subr.mxu0 0.0
        %1523 = vmatpush2.msra.mxu0 0.0
        %1524 = vmatprep.subr.mxu0 0.0
        %1525 = vmatpush2.msra.mxu0 0.0
        %1526 = vmatprep.subr.mxu0 0.0
        %1527 = vmatpush2.msra.mxu0 0.0
        %1528 = vmatprep.subr.mxu0 0.0
        %1529 = vmatpush2.msra.mxu0 0.0
        %1530 = vmatprep.subr.mxu0 0.0
        %1531 = vmatpush2.msra.mxu0 0.0
        %1532 = vmatprep.subr.mxu0 0.0
        %1533 = vmatpush2.msra.mxu0 0.0
        %1534 = vmatprep.subr.mxu0 0.0
        %1535 = vmatpush2.msra.mxu0 0.0
        %1536 = vmatprep.subr.mxu0 0.0
        %1537 = vmatpush2.msra.mxu0 0.0
        %1538 = vmatprep.subr.mxu0 0.0
        %1539 = vmatpush2.msra.mxu0 0.0
        %1540 = vmatprep.subr.mxu0 0.0
        %1541 = vmatpush2.msra.mxu0 0.0
        %1542 = vmatprep.subr.mxu0 0.0
        %1543 = vmatpush2.msra.mxu0 0.0
        %1544 = vmatprep.subr.mxu0 0.0
        %1545 = vmatpush2.msra.mxu0 0.0
        %1546 = vmatprep.subr.mxu0 0.0
        %1547 = vmatpush2.msra.mxu0 0.0
        %1548 = vmatprep.mubr.f32.mxu0 0.0
        %1549 = vmatmul.mubr.f32.gmra.mxu0 %v1476
        %v1550 = vpop.f32.mrf.mxu0
        %v1551 = vadd.f32 0.0, %v1550
        %v1552 = vpop.f32.mrf.mxu0
        %v1553 = vadd.f32 0.0, %v1552
        %1554 = vdwg.mxu0
        %1555 = vmatprep.subr.mxu0 0.0
        %1556 = vmatpush1.msra.mxu0 0.0
        %1557 = vmatprep.subr.mxu0 0.0
        %1558 = vmatpush1.msra.mxu0 0.0
        %1559 = vmatprep.subr.mxu0 0.0
        %1560 = vmatpush1.msra.mxu0 0.0
        %1561 = vmatprep.subr.mxu0 0.0
        %1562 = vmatpush1.msra.mxu0 0.0
        %1563 = vmatprep.subr.mxu0 0.0
        %1564 = vmatpush1.msra.mxu0 0.0
        %1565 = vmatprep.subr.mxu0 0.0
        %1566 = vmatpush1.msra.mxu0 0.0
        %1567 = vmatprep.subr.mxu0 0.0
        %1568 = vmatpush1.msra.mxu0 0.0
        %1569 = vmatprep.subr.mxu0 0.0
        %1570 = vmatpush1.msra.mxu0 0.0
        %1571 = vmatprep.subr.mxu0 0.0
        %1572 = vmatpush1.msra.mxu0 0.0
        %1573 = vmatprep.subr.mxu0 0.0
        %1574 = vmatpush1.msra.mxu0 0.0
        %1575 = vmatprep.subr.mxu0 0.0
        %1576 = vmatpush1.msra.mxu0 0.0
        %1577 = vmatprep.subr.mxu0 0.0
        %1578 = vmatpush1.msra.mxu0 0.0
        %1579 = vmatprep.subr.mxu0 0.0
        %1580 = vmatpush1.msra.mxu0 0.0
        %1581 = vmatprep.subr.mxu0 0.0
        %1582 = vmatpush1.msra.mxu0 0.0
        %1583 = vmatprep.subr.mxu0 0.0
        %1584 = vmatpush1.msra.mxu0 0.0
        %1585 = vmatprep.subr.mxu0 0.0
        %1586 = vmatpush1.msra.mxu0 %v1482
        %1587 = vmatprep.subr.mxu0 0.0
        %1588 = vmatpush2.msra.mxu0 0.0
        %1589 = vmatprep.subr.mxu0 0.0
        %1590 = vmatpush2.msra.mxu0 0.0
        %1591 = vmatprep.subr.mxu0 0.0
        %1592 = vmatpush2.msra.mxu0 0.0
        %1593 = vmatprep.subr.mxu0 0.0
        %1594 = vmatpush2.msra.mxu0 0.0
        %1595 = vmatprep.subr.mxu0 0.0
        %1596 = vmatpush2.msra.mxu0 0.0
        %1597 = vmatprep.subr.mxu0 0.0
        %1598 = vmatpush2.msra.mxu0 0.0
        %1599 = vmatprep.subr.mxu0 0.0
        %1600 = vmatpush2.msra.mxu0 0.0
        %1601 = vmatprep.subr.mxu0 0.0
        %1602 = vmatpush2.msra.mxu0 0.0
        %1603 = vmatprep.subr.mxu0 0.0
        %1604 = vmatpush2.msra.mxu0 0.0
        %1605 = vmatprep.subr.mxu0 0.0
        %1606 = vmatpush2.msra.mxu0 0.0
        %1607 = vmatprep.subr.mxu0 0.0
        %1608 = vmatpush2.msra.mxu0 0.0
        %1609 = vmatprep.subr.mxu0 0.0
        %1610 = vmatpush2.msra.mxu0 0.0
        %1611 = vmatprep.subr.mxu0 0.0
        %1612 = vmatpush2.msra.mxu0 0.0
        %1613 = vmatprep.subr.mxu0 0.0
        %1614 = vmatpush2.msra.mxu0 0.0
        %1615 = vmatprep.subr.mxu0 0.0
        %1616 = vmatpush2.msra.mxu0 0.0
        %1617 = vmatprep.subr.mxu0 0.0
        %1618 = vmatpush2.msra.mxu0 0.0
        %1619 = vmatprep.mubr.f32.mxu0 0.0
        %1620 = vmatmul.mubr.f32.gmra.mxu0 %v1476
        %v1621 = vpop.f32.mrf.mxu0
        %v1622 = vadd.f32 0.0, %v1621
        %v1623 = vpop.f32.mrf.mxu0
        %1624 = vdwg.mxu0
        %v1625 = vadd.f32 %v1463, %v1551
        %v1626 = vadd.f32 %v1464, %v1553
        %v1627 = vadd.f32 %v1465, %v1622
        %v1628 = vld [vmem:[%s2] sm:$0xff]
        %1630 = vset.pattern.permute.xlu0 0
        %1631 = vperm.xlu0 %1630, %v1628
        %v1632 = vpop.permute.xlu0 %1631
        %v1634 = vadd.f32 %v1625, %v1632
        %v1635 = vadd.f32 %v1626, %v1632
        %v1636 = vadd.f32 %v1627, %v1632
        %v1637 = vmax.f32 %v1634, 0.0
        %v1638 = vmax.f32 %v1635, 0.0
        %v1639 = vmax.f32 %v1636, 0.0
        %1640 = vst [vmem:[%s163] sm:$0xff] %v1637
        %1641 = vst [vmem:[%s163 + $0x8] sm:$0xff] %v1638
        %vm1642 = vcmask 261120
        %1643 = vst.msk [vmem:[%s163 + $0x10] sm:$0xff] %vm1642, %v1639
        %s1644 = sand.u32 %s93, 1
        %s1645 = scalar_lea.sflag [#allocation3], %s1644
        %s1646 = sand.u32 %s93, 1
        %s1647 = smul.addr %s1646, 24
        %s1648 = scalar_lea.vmem [#allocation2], %s1647
        // Predicated region
        $region33: #{tpu_custom_call.1} parent=31 // pred_check
          %p1649 = pneg %p103
        $region34: #{tpu_custom_call.1} parent=31 // pred_check_branch
          %1651 = sbr.rel (%p1649) target = $region36
        $region35: #{tpu_custom_call.1} parent=31 // pred_region
          %s1653 = ssub.s32 384, 384
          %1654 = vsyncadd %s1645, %s1653
          %s1655 = smul.addr %s17, 3
          %s1656 = smul.addr %s1655, 128
          %s1657 = scalar_lea.hbm %s3, %s1656
          %s1659 = sshll.u32 %s1648, 4
          %s1660 = int_to_ptr.vmem [resolvable:$true] %s1659
          %1662 = dma.vmem_to_hbm [thread:$0]  %s1660, 384, %s1657, %s1645
        $region36: #{tpu_custom_call.1} parent=31 // pred_fallthru
          _
      $region32: #{tpu_custom_call.1} parent=5 // pred_fallthru
        _
      %p1663 = scmp.le.s32.totalorder 2, %s12
      // Predicated region
      $region37: #{tpu_custom_call.1} parent=5 // pred_check
        %p1664 = pneg %p1663
      $region38: #{tpu_custom_call.1} parent=5 // pred_check_branch
        %1666 = sbr.rel (%p1664) target = $region40
      $region39: #{tpu_custom_call.1} parent=5 // pred_region
        %s1667 = ssub.s32 %s12, 2
        // Predicated region
        $region41: #{tpu_custom_call.1} parent=39 // pred_check
          %p1668 = pneg %p109
        $region42: #{tpu_custom_call.1} parent=39 // pred_check_branch
          %1670 = sbr.rel (%p1668) target = $region44
        $region43: #{tpu_custom_call.1} parent=39 // pred_region
          %s1671 = sand.u32 %s94, 1
          %s1672 = scalar_lea.sflag [#allocation3], %s1671
          %s1673 = sand.u32 %s94, 1
          %s1674 = smul.addr %s1673, 24
          %s1675 = scalar_lea.vmem [#allocation2], %s1674
          %1676 = dma.done %s1672, 384
        $region44: #{tpu_custom_call.1} parent=39 // pred_fallthru
          _
      $region40: #{tpu_custom_call.1} parent=5 // pred_fallthru
        _
    $region6: #{tpu_custom_call.1} parent=1 // loop_footer
      %s16 = sadd.s32 1, %s12
    $region7: #{tpu_custom_call.1} parent=1 // loop_footer_branch
      %11 = sbr.rel target = $region3
    $region8: #{tpu_custom_call.1} parent=1 // loop_exit
      _
    %1677 = vsyncpa [#allocation3], 1
    %s1678 = scalar_lea.sflag [#allocation3], 1
    %1679 = vsyncpa %s1678, 1

</llo_original>
